<compile_context>
chip_gen: v5e
topology: v5e:2x2
jax: 0.10.0
libtpu: 0.0.40
codegen_flags: <defaults>
</compile_context>

<pallas_src>
import functools

import jax
import jax.numpy as jnp
from jax import lax
from jax.experimental import pallas as pl
from jax.experimental.pallas import tpu as pltpu


# ---------------- Pallas kernel (one fused attention block per batch row) ----

def _attention_kernel(x_ref, wqkv_ref, wout_ref, bout_ref, o_ref, *,
                      heads, dim_head, scale):
    # x_ref   : (1, N, D)        input tokens for this batch element
    # wqkv_ref: (D, 3*inner)     qkv projection (already transposed: x @ W)
    # wout_ref: (inner, D)       output projection (already transposed)
    # bout_ref: (1, D)           output projection bias
    # o_ref   : (1, N, D)
    x = x_ref[0]                                             # (N, D) f32
    n = x.shape[0]
    inner = heads * dim_head
    d_out = wout_ref.shape[1]

    # Fused qkv projection on the MXU; result lives in vregs/VMEM only.
    qkv = jnp.dot(x, wqkv_ref[...], preferred_element_type=jnp.float32)  # (N, 3*inner)

    acc = jnp.zeros((n, d_out), jnp.float32)
    for h in range(heads):                                   # static unroll (tiny)
        q_h = qkv[:, h * dim_head:(h + 1) * dim_head]                        # (N, dh)
        k_h = qkv[:, inner + h * dim_head:inner + (h + 1) * dim_head]        # (N, dh)
        v_h = qkv[:, 2 * inner + h * dim_head:2 * inner + (h + 1) * dim_head]

        # q @ k^T without materializing a transpose: contract last dims.
        dots = lax.dot_general(q_h, k_h, (((1,), (1,)), ((), ())),
                               preferred_element_type=jnp.float32) * scale   # (N, N)

        # Numerically-stable softmax (f32, matches torch.nn.Softmax).
        m = jnp.max(dots, axis=-1, keepdims=True)
        e = jnp.exp(dots - m)
        attn = e / jnp.sum(e, axis=-1, keepdims=True)

        out_h = jnp.dot(attn, v_h, preferred_element_type=jnp.float32)       # (N, dh)

        # Fold head-merge + output projection into an accumulation:
        #   concat_h(out_h) @ W_out == sum_h out_h @ W_out[h*dh:(h+1)*dh, :]
        w_h = wout_ref[h * dim_head:(h + 1) * dim_head, :]                   # (dh, D)
        acc = acc + jnp.dot(out_h, w_h, preferred_element_type=jnp.float32)

    o_ref[0] = (acc + bout_ref[...]).astype(o_ref.dtype)


# ---------------- wrapper ----------------------------------------------------

def attention_forward(x, w_qkv, w_out, b_out, *, heads, dim_head):
    """x: (B, N, D); w_qkv: (3*inner, D) PyTorch layout; w_out: (D, inner); b_out: (D,)."""
    B, N, D = x.shape
    inner = heads * dim_head
    scale = float(dim_head) ** -0.5

    wqkv_t = jnp.transpose(w_qkv).astype(jnp.float32)        # (D, 3*inner)
    wout_t = jnp.transpose(w_out).astype(jnp.float32)        # (inner, D)
    bout = b_out.reshape(1, D).astype(jnp.float32)

    kernel = functools.partial(_attention_kernel,
                               heads=heads, dim_head=dim_head, scale=scale)

    return pl.pallas_call(
        kernel,
        out_shape=jax.ShapeDtypeStruct((B, N, D), jnp.float32),
        grid=(B,),
        in_specs=[
            pl.BlockSpec((1, N, D), lambda b: (b, 0, 0)),
            pl.BlockSpec((D, 3 * inner), lambda b: (0, 0)),
            pl.BlockSpec((inner, D), lambda b: (0, 0)),
            pl.BlockSpec((1, D), lambda b: (0, 0)),
        ],
        out_specs=pl.BlockSpec((1, N, D), lambda b: (b, 0, 0)),
        compiler_params=pltpu.CompilerParams(
            dimension_semantics=("parallel",)),   # B-way: feeds both v7x TCs
    )(x.astype(jnp.float32), wqkv_t, wout_t, bout)


# ---------------- params / reference -----------------------------------------

def init_attention_params(key, dim, heads, dim_head):
    inner = heads * dim_head
    project_out = not (heads == 1 and dim_head == dim)
    k1, k2, k3 = jax.random.split(key, 3)
    # nn.Linear-style init (uniform +-1/sqrt(fan_in)), deterministic.
    w_qkv = jax.random.uniform(k1, (3 * inner, dim), jnp.float32,
                               -1.0, 1.0) / jnp.sqrt(dim)
    if project_out:
        w_out = jax.random.uniform(k2, (dim, inner), jnp.float32,
                                   -1.0, 1.0) / jnp.sqrt(inner)
        b_out = jax.random.uniform(k3, (dim,), jnp.float32,
                                   -1.0, 1.0) / jnp.sqrt(inner)
    else:
        # to_out = nn.Identity(): identity projection, zero bias (inner == dim here).
        w_out = jnp.eye(dim, dtype=jnp.float32)
        b_out = jnp.zeros((dim,), jnp.float32)
    # TODO(synk): nn.Dropout(p=0.0) inside to_out is identity at inference; not modeled.
    return w_qkv, w_out, b_out


def attention_ref(x, w_qkv, w_out, b_out, heads, dim_head):
    """Pure-JAX reference mirroring the PyTorch forward (for correctness check)."""
    B, N, D = x.shape
    inner = heads * dim_head
    qkv = jnp.einsum('bnd,fd->bnf', x, w_qkv)
    q, k, v = jnp.split(qkv, 3, axis=-1)
    to_h = lambda t: jnp.transpose(t.reshape(B, N, heads, dim_head), (0, 2, 1, 3))
    q, k, v = to_h(q), to_h(k), to_h(v)
    dots = jnp.einsum('bhnd,bhmd->bhnm', q, k) * (float(dim_head) ** -0.5)
    attn = jax.nn.softmax(dots, axis=-1)
    out = jnp.einsum('bhnm,bhmd->bhnd', attn, v)
    out = jnp.transpose(out, (0, 2, 1, 3)).reshape(B, N, inner)
    return jnp.einsum('bni,di->bnd', out, w_out) + b_out[None, None, :]


# ---------------- main --------------------------------------------------------

if __name__ == "__main__":
    key = jax.random.PRNGKey(0)
    B, N, dim = 2, 8, 32                 # small: batch=2, seq=8, hidden=32
    heads, dim_head = 8, 64              # module defaults -> inner_dim = 512

    key, kx, kp = jax.random.split(key, 3)
    x = jax.random.normal(kx, (B, N, dim), jnp.float32)
    w_qkv, w_out, b_out = init_attention_params(kp, dim, heads, dim_head)

    fwd = jax.jit(functools.partial(attention_forward,
                                    heads=heads, dim_head=dim_head))
    y = jax.block_until_ready(fwd(x, w_qkv, w_out, b_out))

    y_ref = attention_ref(x, w_qkv, w_out, b_out, heads, dim_head)

    assert y.shape == (B, N, dim), y.shape
    assert bool(jnp.isfinite(y).all())
    assert bool(jnp.allclose(y, y_ref, atol=1e-4, rtol=1e-4)), \
        float(jnp.max(jnp.abs(y - y_ref)))
    print("KERNEL_OK")
</pallas_src>

<mosaic_0001>
module attributes {stable_mosaic.version = 11 : i64} {
  func.func @_attention_kernel(%arg0: i32, %arg1: memref<1x8x32xf32, #tpu.memory_space<vmem>>, %arg2: memref<32x1536xf32, #tpu.memory_space<vmem>>, %arg3: memref<512x32xf32, #tpu.memory_space<vmem>>, %arg4: memref<1x32xf32, #tpu.memory_space<vmem>>, %arg5: memref<1x8x32xf32, #tpu.memory_space<vmem>>) attributes {dimension_semantics = [#tpu.dimension_semantics<parallel>], iteration_bounds = array<i64: 2>, scalar_prefetch = 0 : i64, scratch_operands = 0 : i64, tpu.core_type = #tpu.core_type<tc>, window_params = [{transform_indices = @transform_0, window_bounds = array<i64: 1, 8, 32>}, {pipeline_mode = #tpu.pipeline_mode<synchronous>, transform_indices = @transform_1, window_bounds = array<i64: 32, 1536>}, {pipeline_mode = #tpu.pipeline_mode<synchronous>, transform_indices = @transform_2, window_bounds = array<i64: 512, 32>}, {pipeline_mode = #tpu.pipeline_mode<synchronous>, transform_indices = @transform_3, window_bounds = array<i64: 1, 32>}, {transform_indices = @transform_4, window_bounds = array<i64: 1, 8, 32>}]} {
    %c0 = arith.constant 0 : index
    %c0_0 = arith.constant 0 : index
    %c0_1 = arith.constant 0 : index
    %0 = vector.load %arg1[%c0, %c0_0, %c0_1] : memref<1x8x32xf32, #tpu.memory_space<vmem>>, vector<1x8x32xf32>
    %1 = vector.shape_cast %0 : vector<1x8x32xf32> to vector<8x32xf32>
    %c0_2 = arith.constant 0 : index
    %c0_3 = arith.constant 0 : index
    %2 = vector.load %arg2[%c0_2, %c0_3] : memref<32x1536xf32, #tpu.memory_space<vmem>>, vector<32x1536xf32>
    %cst = arith.constant dense<0.000000e+00> : vector<8x1536xf32>
    %3 = tpu.matmul %1, %2, %cst {dimension_numbers = #tpu.dot_dimension_numbers<[1], [0], [0], [1], [0, 0, 1, 1], [], []>} : vector<8x32xf32>, vector<32x1536xf32>, vector<8x1536xf32> -> vector<8x1536xf32>
    %cst_4 = arith.constant 0.000000e+00 : f32
    %4 = vector.broadcast %cst_4 : f32 to vector<8x32xf32>
    %5 = vector.extract_strided_slice %3 {offsets = [0, 0], sizes = [8, 64], strides = [1, 1]} : vector<8x1536xf32> to vector<8x64xf32>
    %6 = vector.extract_strided_slice %3 {offsets = [0, 512], sizes = [8, 64], strides = [1, 1]} : vector<8x1536xf32> to vector<8x64xf32>
    %7 = vector.extract_strided_slice %3 {offsets = [0, 1024], sizes = [8, 64], strides = [1, 1]} : vector<8x1536xf32> to vector<8x64xf32>
    %cst_5 = arith.constant dense<0.000000e+00> : vector<8x8xf32>
    %8 = tpu.matmul %5, %6, %cst_5 {dimension_numbers = #tpu.dot_dimension_numbers<[1], [1], [0], [0], [0, 0, 1, 0], [], []>} : vector<8x64xf32>, vector<8x64xf32>, vector<8x8xf32> -> vector<8x8xf32>
    %cst_6 = arith.constant 1.250000e-01 : f32
    %9 = vector.broadcast %cst_6 : f32 to vector<8x8xf32>
    %10 = arith.mulf %8, %9 : vector<8x8xf32>
    %cst_7 = arith.constant dense<0xFF800000> : vector<8xf32>
    %11 = vector.multi_reduction <maximumf>, %10, %cst_7 [1] : vector<8x8xf32> to vector<8xf32>
    %12 = vector.shape_cast %11 : vector<8xf32> to vector<8x1xf32>
    %13 = vector.broadcast %12 : vector<8x1xf32> to vector<8x8xf32>
    %14 = arith.subf %10, %13 : vector<8x8xf32>
    %15 = math.exp %14 : vector<8x8xf32>
    %cst_8 = arith.constant dense<0.000000e+00> : vector<8xf32>
    %16 = vector.multi_reduction <add>, %15, %cst_8 [1] : vector<8x8xf32> to vector<8xf32>
    %17 = vector.shape_cast %16 : vector<8xf32> to vector<8x1xf32>
    %18 = vector.broadcast %17 : vector<8x1xf32> to vector<8x8xf32>
    %19 = arith.divf %15, %18 : vector<8x8xf32>
    %cst_9 = arith.constant dense<0.000000e+00> : vector<8x64xf32>
    %20 = tpu.matmul %19, %7, %cst_9 {dimension_numbers = #tpu.dot_dimension_numbers<[1], [0], [0], [1], [0, 0, 1, 1], [], []>} : vector<8x8xf32>, vector<8x64xf32>, vector<8x64xf32> -> vector<8x64xf32>
    %c0_10 = arith.constant 0 : index
    %c0_11 = arith.constant 0 : index
    %21 = vector.load %arg3[%c0_10, %c0_11] : memref<512x32xf32, #tpu.memory_space<vmem>>, vector<64x32xf32>
    %cst_12 = arith.constant dense<0.000000e+00> : vector<8x32xf32>
    %22 = tpu.matmul %20, %21, %cst_12 {dimension_numbers = #tpu.dot_dimension_numbers<[1], [0], [0], [1], [0, 0, 1, 1], [], []>} : vector<8x64xf32>, vector<64x32xf32>, vector<8x32xf32> -> vector<8x32xf32>
    %23 = arith.addf %4, %22 : vector<8x32xf32>
    %24 = vector.extract_strided_slice %3 {offsets = [0, 64], sizes = [8, 64], strides = [1, 1]} : vector<8x1536xf32> to vector<8x64xf32>
    %25 = vector.extract_strided_slice %3 {offsets = [0, 576], sizes = [8, 64], strides = [1, 1]} : vector<8x1536xf32> to vector<8x64xf32>
    %26 = vector.extract_strided_slice %3 {offsets = [0, 1088], sizes = [8, 64], strides = [1, 1]} : vector<8x1536xf32> to vector<8x64xf32>
    %cst_13 = arith.constant dense<0.000000e+00> : vector<8x8xf32>
    %27 = tpu.matmul %24, %25, %cst_13 {dimension_numbers = #tpu.dot_dimension_numbers<[1], [1], [0], [0], [0, 0, 1, 0], [], []>} : vector<8x64xf32>, vector<8x64xf32>, vector<8x8xf32> -> vector<8x8xf32>
    %cst_14 = arith.constant 1.250000e-01 : f32
    %28 = vector.broadcast %cst_14 : f32 to vector<8x8xf32>
    %29 = arith.mulf %27, %28 : vector<8x8xf32>
    %cst_15 = arith.constant dense<0xFF800000> : vector<8xf32>
    %30 = vector.multi_reduction <maximumf>, %29, %cst_15 [1] : vector<8x8xf32> to vector<8xf32>
    %31 = vector.shape_cast %30 : vector<8xf32> to vector<8x1xf32>
    %32 = vector.broadcast %31 : vector<8x1xf32> to vector<8x8xf32>
    %33 = arith.subf %29, %32 : vector<8x8xf32>
    %34 = math.exp %33 : vector<8x8xf32>
    %cst_16 = arith.constant dense<0.000000e+00> : vector<8xf32>
    %35 = vector.multi_reduction <add>, %34, %cst_16 [1] : vector<8x8xf32> to vector<8xf32>
    %36 = vector.shape_cast %35 : vector<8xf32> to vector<8x1xf32>
    %37 = vector.broadcast %36 : vector<8x1xf32> to vector<8x8xf32>
    %38 = arith.divf %34, %37 : vector<8x8xf32>
    %cst_17 = arith.constant dense<0.000000e+00> : vector<8x64xf32>
    %39 = tpu.matmul %38, %26, %cst_17 {dimension_numbers = #tpu.dot_dimension_numbers<[1], [0], [0], [1], [0, 0, 1, 1], [], []>} : vector<8x8xf32>, vector<8x64xf32>, vector<8x64xf32> -> vector<8x64xf32>
    %c64 = arith.constant 64 : index
    %c0_18 = arith.constant 0 : index
    %40 = vector.load %arg3[%c64, %c0_18] : memref<512x32xf32, #tpu.memory_space<vmem>>, vector<64x32xf32>
    %cst_19 = arith.constant dense<0.000000e+00> : vector<8x32xf32>
    %41 = tpu.matmul %39, %40, %cst_19 {dimension_numbers = #tpu.dot_dimension_numbers<[1], [0], [0], [1], [0, 0, 1, 1], [], []>} : vector<8x64xf32>, vector<64x32xf32>, vector<8x32xf32> -> vector<8x32xf32>
    %42 = arith.addf %23, %41 : vector<8x32xf32>
    %43 = vector.extract_strided_slice %3 {offsets = [0, 128], sizes = [8, 64], strides = [1, 1]} : vector<8x1536xf32> to vector<8x64xf32>
    %44 = vector.extract_strided_slice %3 {offsets = [0, 640], sizes = [8, 64], strides = [1, 1]} : vector<8x1536xf32> to vector<8x64xf32>
    %45 = vector.extract_strided_slice %3 {offsets = [0, 1152], sizes = [8, 64], strides = [1, 1]} : vector<8x1536xf32> to vector<8x64xf32>
    %cst_20 = arith.constant dense<0.000000e+00> : vector<8x8xf32>
    %46 = tpu.matmul %43, %44, %cst_20 {dimension_numbers = #tpu.dot_dimension_numbers<[1], [1], [0], [0], [0, 0, 1, 0], [], []>} : vector<8x64xf32>, vector<8x64xf32>, vector<8x8xf32> -> vector<8x8xf32>
    %cst_21 = arith.constant 1.250000e-01 : f32
    %47 = vector.broadcast %cst_21 : f32 to vector<8x8xf32>
    %48 = arith.mulf %46, %47 : vector<8x8xf32>
    %cst_22 = arith.constant dense<0xFF800000> : vector<8xf32>
    %49 = vector.multi_reduction <maximumf>, %48, %cst_22 [1] : vector<8x8xf32> to vector<8xf32>
    %50 = vector.shape_cast %49 : vector<8xf32> to vector<8x1xf32>
    %51 = vector.broadcast %50 : vector<8x1xf32> to vector<8x8xf32>
    %52 = arith.subf %48, %51 : vector<8x8xf32>
    %53 = math.exp %52 : vector<8x8xf32>
    %cst_23 = arith.constant dense<0.000000e+00> : vector<8xf32>
    %54 = vector.multi_reduction <add>, %53, %cst_23 [1] : vector<8x8xf32> to vector<8xf32>
    %55 = vector.shape_cast %54 : vector<8xf32> to vector<8x1xf32>
    %56 = vector.broadcast %55 : vector<8x1xf32> to vector<8x8xf32>
    %57 = arith.divf %53, %56 : vector<8x8xf32>
    %cst_24 = arith.constant dense<0.000000e+00> : vector<8x64xf32>
    %58 = tpu.matmul %57, %45, %cst_24 {dimension_numbers = #tpu.dot_dimension_numbers<[1], [0], [0], [1], [0, 0, 1, 1], [], []>} : vector<8x8xf32>, vector<8x64xf32>, vector<8x64xf32> -> vector<8x64xf32>
    %c128 = arith.constant 128 : index
    %c0_25 = arith.constant 0 : index
    %59 = vector.load %arg3[%c128, %c0_25] : memref<512x32xf32, #tpu.memory_space<vmem>>, vector<64x32xf32>
    %cst_26 = arith.constant dense<0.000000e+00> : vector<8x32xf32>
    %60 = tpu.matmul %58, %59, %cst_26 {dimension_numbers = #tpu.dot_dimension_numbers<[1], [0], [0], [1], [0, 0, 1, 1], [], []>} : vector<8x64xf32>, vector<64x32xf32>, vector<8x32xf32> -> vector<8x32xf32>
    %61 = arith.addf %42, %60 : vector<8x32xf32>
    %62 = vector.extract_strided_slice %3 {offsets = [0, 192], sizes = [8, 64], strides = [1, 1]} : vector<8x1536xf32> to vector<8x64xf32>
    %63 = vector.extract_strided_slice %3 {offsets = [0, 704], sizes = [8, 64], strides = [1, 1]} : vector<8x1536xf32> to vector<8x64xf32>
    %64 = vector.extract_strided_slice %3 {offsets = [0, 1216], sizes = [8, 64], strides = [1, 1]} : vector<8x1536xf32> to vector<8x64xf32>
    %cst_27 = arith.constant dense<0.000000e+00> : vector<8x8xf32>
    %65 = tpu.matmul %62, %63, %cst_27 {dimension_numbers = #tpu.dot_dimension_numbers<[1], [1], [0], [0], [0, 0, 1, 0], [], []>} : vector<8x64xf32>, vector<8x64xf32>, vector<8x8xf32> -> vector<8x8xf32>
    %cst_28 = arith.constant 1.250000e-01 : f32
    %66 = vector.broadcast %cst_28 : f32 to vector<8x8xf32>
    %67 = arith.mulf %65, %66 : vector<8x8xf32>
    %cst_29 = arith.constant dense<0xFF800000> : vector<8xf32>
    %68 = vector.multi_reduction <maximumf>, %67, %cst_29 [1] : vector<8x8xf32> to vector<8xf32>
    %69 = vector.shape_cast %68 : vector<8xf32> to vector<8x1xf32>
    %70 = vector.broadcast %69 : vector<8x1xf32> to vector<8x8xf32>
    %71 = arith.subf %67, %70 : vector<8x8xf32>
    %72 = math.exp %71 : vector<8x8xf32>
    %cst_30 = arith.constant dense<0.000000e+00> : vector<8xf32>
    %73 = vector.multi_reduction <add>, %72, %cst_30 [1] : vector<8x8xf32> to vector<8xf32>
    %74 = vector.shape_cast %73 : vector<8xf32> to vector<8x1xf32>
    %75 = vector.broadcast %74 : vector<8x1xf32> to vector<8x8xf32>
    %76 = arith.divf %72, %75 : vector<8x8xf32>
    %cst_31 = arith.constant dense<0.000000e+00> : vector<8x64xf32>
    %77 = tpu.matmul %76, %64, %cst_31 {dimension_numbers = #tpu.dot_dimension_numbers<[1], [0], [0], [1], [0, 0, 1, 1], [], []>} : vector<8x8xf32>, vector<8x64xf32>, vector<8x64xf32> -> vector<8x64xf32>
    %c192 = arith.constant 192 : index
    %c0_32 = arith.constant 0 : index
    %78 = vector.load %arg3[%c192, %c0_32] : memref<512x32xf32, #tpu.memory_space<vmem>>, vector<64x32xf32>
    %cst_33 = arith.constant dense<0.000000e+00> : vector<8x32xf32>
    %79 = tpu.matmul %77, %78, %cst_33 {dimension_numbers = #tpu.dot_dimension_numbers<[1], [0], [0], [1], [0, 0, 1, 1], [], []>} : vector<8x64xf32>, vector<64x32xf32>, vector<8x32xf32> -> vector<8x32xf32>
    %80 = arith.addf %61, %79 : vector<8x32xf32>
    %81 = vector.extract_strided_slice %3 {offsets = [0, 256], sizes = [8, 64], strides = [1, 1]} : vector<8x1536xf32> to vector<8x64xf32>
    %82 = vector.extract_strided_slice %3 {offsets = [0, 768], sizes = [8, 64], strides = [1, 1]} : vector<8x1536xf32> to vector<8x64xf32>
    %83 = vector.extract_strided_slice %3 {offsets = [0, 1280], sizes = [8, 64], strides = [1, 1]} : vector<8x1536xf32> to vector<8x64xf32>
    %cst_34 = arith.constant dense<0.000000e+00> : vector<8x8xf32>
    %84 = tpu.matmul %81, %82, %cst_34 {dimension_numbers = #tpu.dot_dimension_numbers<[1], [1], [0], [0], [0, 0, 1, 0], [], []>} : vector<8x64xf32>, vector<8x64xf32>, vector<8x8xf32> -> vector<8x8xf32>
    %cst_35 = arith.constant 1.250000e-01 : f32
    %85 = vector.broadcast %cst_35 : f32 to vector<8x8xf32>
    %86 = arith.mulf %84, %85 : vector<8x8xf32>
    %cst_36 = arith.constant dense<0xFF800000> : vector<8xf32>
    %87 = vector.multi_reduction <maximumf>, %86, %cst_36 [1] : vector<8x8xf32> to vector<8xf32>
    %88 = vector.shape_cast %87 : vector<8xf32> to vector<8x1xf32>
    %89 = vector.broadcast %88 : vector<8x1xf32> to vector<8x8xf32>
    %90 = arith.subf %86, %89 : vector<8x8xf32>
    %91 = math.exp %90 : vector<8x8xf32>
    %cst_37 = arith.constant dense<0.000000e+00> : vector<8xf32>
    %92 = vector.multi_reduction <add>, %91, %cst_37 [1] : vector<8x8xf32> to vector<8xf32>
    %93 = vector.shape_cast %92 : vector<8xf32> to vector<8x1xf32>
    %94 = vector.broadcast %93 : vector<8x1xf32> to vector<8x8xf32>
    %95 = arith.divf %91, %94 : vector<8x8xf32>
    %cst_38 = arith.constant dense<0.000000e+00> : vector<8x64xf32>
    %96 = tpu.matmul %95, %83, %cst_38 {dimension_numbers = #tpu.dot_dimension_numbers<[1], [0], [0], [1], [0, 0, 1, 1], [], []>} : vector<8x8xf32>, vector<8x64xf32>, vector<8x64xf32> -> vector<8x64xf32>
    %c256 = arith.constant 256 : index
    %c0_39 = arith.constant 0 : index
    %97 = vector.load %arg3[%c256, %c0_39] : memref<512x32xf32, #tpu.memory_space<vmem>>, vector<64x32xf32>
    %cst_40 = arith.constant dense<0.000000e+00> : vector<8x32xf32>
    %98 = tpu.matmul %96, %97, %cst_40 {dimension_numbers = #tpu.dot_dimension_numbers<[1], [0], [0], [1], [0, 0, 1, 1], [], []>} : vector<8x64xf32>, vector<64x32xf32>, vector<8x32xf32> -> vector<8x32xf32>
    %99 = arith.addf %80, %98 : vector<8x32xf32>
    %100 = vector.extract_strided_slice %3 {offsets = [0, 320], sizes = [8, 64], strides = [1, 1]} : vector<8x1536xf32> to vector<8x64xf32>
    %101 = vector.extract_strided_slice %3 {offsets = [0, 832], sizes = [8, 64], strides = [1, 1]} : vector<8x1536xf32> to vector<8x64xf32>
    %102 = vector.extract_strided_slice %3 {offsets = [0, 1344], sizes = [8, 64], strides = [1, 1]} : vector<8x1536xf32> to vector<8x64xf32>
    %cst_41 = arith.constant dense<0.000000e+00> : vector<8x8xf32>
    %103 = tpu.matmul %100, %101, %cst_41 {dimension_numbers = #tpu.dot_dimension_numbers<[1], [1], [0], [0], [0, 0, 1, 0], [], []>} : vector<8x64xf32>, vector<8x64xf32>, vector<8x8xf32> -> vector<8x8xf32>
    %cst_42 = arith.constant 1.250000e-01 : f32
    %104 = vector.broadcast %cst_42 : f32 to vector<8x8xf32>
    %105 = arith.mulf %103, %104 : vector<8x8xf32>
    %cst_43 = arith.constant dense<0xFF800000> : vector<8xf32>
    %106 = vector.multi_reduction <maximumf>, %105, %cst_43 [1] : vector<8x8xf32> to vector<8xf32>
    %107 = vector.shape_cast %106 : vector<8xf32> to vector<8x1xf32>
    %108 = vector.broadcast %107 : vector<8x1xf32> to vector<8x8xf32>
    %109 = arith.subf %105, %108 : vector<8x8xf32>
    %110 = math.exp %109 : vector<8x8xf32>
    %cst_44 = arith.constant dense<0.000000e+00> : vector<8xf32>
    %111 = vector.multi_reduction <add>, %110, %cst_44 [1] : vector<8x8xf32> to vector<8xf32>
    %112 = vector.shape_cast %111 : vector<8xf32> to vector<8x1xf32>
    %113 = vector.broadcast %112 : vector<8x1xf32> to vector<8x8xf32>
    %114 = arith.divf %110, %113 : vector<8x8xf32>
    %cst_45 = arith.constant dense<0.000000e+00> : vector<8x64xf32>
    %115 = tpu.matmul %114, %102, %cst_45 {dimension_numbers = #tpu.dot_dimension_numbers<[1], [0], [0], [1], [0, 0, 1, 1], [], []>} : vector<8x8xf32>, vector<8x64xf32>, vector<8x64xf32> -> vector<8x64xf32>
    %c320 = arith.constant 320 : index
    %c0_46 = arith.constant 0 : index
    %116 = vector.load %arg3[%c320, %c0_46] : memref<512x32xf32, #tpu.memory_space<vmem>>, vector<64x32xf32>
    %cst_47 = arith.constant dense<0.000000e+00> : vector<8x32xf32>
    %117 = tpu.matmul %115, %116, %cst_47 {dimension_numbers = #tpu.dot_dimension_numbers<[1], [0], [0], [1], [0, 0, 1, 1], [], []>} : vector<8x64xf32>, vector<64x32xf32>, vector<8x32xf32> -> vector<8x32xf32>
    %118 = arith.addf %99, %117 : vector<8x32xf32>
    %119 = vector.extract_strided_slice %3 {offsets = [0, 384], sizes = [8, 64], strides = [1, 1]} : vector<8x1536xf32> to vector<8x64xf32>
    %120 = vector.extract_strided_slice %3 {offsets = [0, 896], sizes = [8, 64], strides = [1, 1]} : vector<8x1536xf32> to vector<8x64xf32>
    %121 = vector.extract_strided_slice %3 {offsets = [0, 1408], sizes = [8, 64], strides = [1, 1]} : vector<8x1536xf32> to vector<8x64xf32>
    %cst_48 = arith.constant dense<0.000000e+00> : vector<8x8xf32>
    %122 = tpu.matmul %119, %120, %cst_48 {dimension_numbers = #tpu.dot_dimension_numbers<[1], [1], [0], [0], [0, 0, 1, 0], [], []>} : vector<8x64xf32>, vector<8x64xf32>, vector<8x8xf32> -> vector<8x8xf32>
    %cst_49 = arith.constant 1.250000e-01 : f32
    %123 = vector.broadcast %cst_49 : f32 to vector<8x8xf32>
    %124 = arith.mulf %122, %123 : vector<8x8xf32>
    %cst_50 = arith.constant dense<0xFF800000> : vector<8xf32>
    %125 = vector.multi_reduction <maximumf>, %124, %cst_50 [1] : vector<8x8xf32> to vector<8xf32>
    %126 = vector.shape_cast %125 : vector<8xf32> to vector<8x1xf32>
    %127 = vector.broadcast %126 : vector<8x1xf32> to vector<8x8xf32>
    %128 = arith.subf %124, %127 : vector<8x8xf32>
    %129 = math.exp %128 : vector<8x8xf32>
    %cst_51 = arith.constant dense<0.000000e+00> : vector<8xf32>
    %130 = vector.multi_reduction <add>, %129, %cst_51 [1] : vector<8x8xf32> to vector<8xf32>
    %131 = vector.shape_cast %130 : vector<8xf32> to vector<8x1xf32>
    %132 = vector.broadcast %131 : vector<8x1xf32> to vector<8x8xf32>
    %133 = arith.divf %129, %132 : vector<8x8xf32>
    %cst_52 = arith.constant dense<0.000000e+00> : vector<8x64xf32>
    %134 = tpu.matmul %133, %121, %cst_52 {dimension_numbers = #tpu.dot_dimension_numbers<[1], [0], [0], [1], [0, 0, 1, 1], [], []>} : vector<8x8xf32>, vector<8x64xf32>, vector<8x64xf32> -> vector<8x64xf32>
    %c384 = arith.constant 384 : index
    %c0_53 = arith.constant 0 : index
    %135 = vector.load %arg3[%c384, %c0_53] : memref<512x32xf32, #tpu.memory_space<vmem>>, vector<64x32xf32>
    %cst_54 = arith.constant dense<0.000000e+00> : vector<8x32xf32>
    %136 = tpu.matmul %134, %135, %cst_54 {dimension_numbers = #tpu.dot_dimension_numbers<[1], [0], [0], [1], [0, 0, 1, 1], [], []>} : vector<8x64xf32>, vector<64x32xf32>, vector<8x32xf32> -> vector<8x32xf32>
    %137 = arith.addf %118, %136 : vector<8x32xf32>
    %138 = vector.extract_strided_slice %3 {offsets = [0, 448], sizes = [8, 64], strides = [1, 1]} : vector<8x1536xf32> to vector<8x64xf32>
    %139 = vector.extract_strided_slice %3 {offsets = [0, 960], sizes = [8, 64], strides = [1, 1]} : vector<8x1536xf32> to vector<8x64xf32>
    %140 = vector.extract_strided_slice %3 {offsets = [0, 1472], sizes = [8, 64], strides = [1, 1]} : vector<8x1536xf32> to vector<8x64xf32>
    %cst_55 = arith.constant dense<0.000000e+00> : vector<8x8xf32>
    %141 = tpu.matmul %138, %139, %cst_55 {dimension_numbers = #tpu.dot_dimension_numbers<[1], [1], [0], [0], [0, 0, 1, 0], [], []>} : vector<8x64xf32>, vector<8x64xf32>, vector<8x8xf32> -> vector<8x8xf32>
    %cst_56 = arith.constant 1.250000e-01 : f32
    %142 = vector.broadcast %cst_56 : f32 to vector<8x8xf32>
    %143 = arith.mulf %141, %142 : vector<8x8xf32>
    %cst_57 = arith.constant dense<0xFF800000> : vector<8xf32>
    %144 = vector.multi_reduction <maximumf>, %143, %cst_57 [1] : vector<8x8xf32> to vector<8xf32>
    %145 = vector.shape_cast %144 : vector<8xf32> to vector<8x1xf32>
    %146 = vector.broadcast %145 : vector<8x1xf32> to vector<8x8xf32>
    %147 = arith.subf %143, %146 : vector<8x8xf32>
    %148 = math.exp %147 : vector<8x8xf32>
    %cst_58 = arith.constant dense<0.000000e+00> : vector<8xf32>
    %149 = vector.multi_reduction <add>, %148, %cst_58 [1] : vector<8x8xf32> to vector<8xf32>
    %150 = vector.shape_cast %149 : vector<8xf32> to vector<8x1xf32>
    %151 = vector.broadcast %150 : vector<8x1xf32> to vector<8x8xf32>
    %152 = arith.divf %148, %151 : vector<8x8xf32>
    %cst_59 = arith.constant dense<0.000000e+00> : vector<8x64xf32>
    %153 = tpu.matmul %152, %140, %cst_59 {dimension_numbers = #tpu.dot_dimension_numbers<[1], [0], [0], [1], [0, 0, 1, 1], [], []>} : vector<8x8xf32>, vector<8x64xf32>, vector<8x64xf32> -> vector<8x64xf32>
    %c448 = arith.constant 448 : index
    %c0_60 = arith.constant 0 : index
    %154 = vector.load %arg3[%c448, %c0_60] : memref<512x32xf32, #tpu.memory_space<vmem>>, vector<64x32xf32>
    %cst_61 = arith.constant dense<0.000000e+00> : vector<8x32xf32>
    %155 = tpu.matmul %153, %154, %cst_61 {dimension_numbers = #tpu.dot_dimension_numbers<[1], [0], [0], [1], [0, 0, 1, 1], [], []>} : vector<8x64xf32>, vector<64x32xf32>, vector<8x32xf32> -> vector<8x32xf32>
    %156 = arith.addf %137, %155 : vector<8x32xf32>
    %c0_62 = arith.constant 0 : index
    %c0_63 = arith.constant 0 : index
    %157 = vector.load %arg4[%c0_62, %c0_63] : memref<1x32xf32, #tpu.memory_space<vmem>>, vector<1x32xf32>
    %158 = vector.broadcast %157 : vector<1x32xf32> to vector<8x32xf32>
    %159 = arith.addf %156, %158 : vector<8x32xf32>
    %c0_64 = arith.constant 0 : index
    %c0_65 = arith.constant 0 : index
    %c0_66 = arith.constant 0 : index
    %160 = vector.load %arg5[%c0_64, %c0_65, %c0_66] : memref<1x8x32xf32, #tpu.memory_space<vmem>>, vector<1x8x32xf32>
    %161 = vector.shape_cast %160 : vector<1x8x32xf32> to vector<8x32xf32>
    %162 = vector.shape_cast %159 : vector<8x32xf32> to vector<1x8x32xf32>
    tpu.vector_store %arg5[%c0_64, %c0_65, %c0_66], %162 {strides = array<i32>} : memref<1x8x32xf32, #tpu.memory_space<vmem>>, vector<1x8x32xf32>,
    return
  }
  func.func @transform_0(%arg0: i32) -> (i32, i32, i32) {
    %c0_i32 = arith.constant 0 : i32
    %c0_i32_0 = arith.constant 0 : i32
    %c0_i32_1 = arith.constant 0 : i32
    return %arg0, %c0_i32, %c0_i32_0 : i32, i32, i32
  }
  func.func @transform_1(%arg0: i32) -> (i32, i32) {
    %c0_i32 = arith.constant 0 : i32
    %c0_i32_0 = arith.constant 0 : i32
    %c0_i32_1 = arith.constant 0 : i32
    return %c0_i32, %c0_i32_0 : i32, i32
  }
  func.func @transform_2(%arg0: i32) -> (i32, i32) {
    %c0_i32 = arith.constant 0 : i32
    %c0_i32_0 = arith.constant 0 : i32
    %c0_i32_1 = arith.constant 0 : i32
    return %c0_i32, %c0_i32_0 : i32, i32
  }
  func.func @transform_3(%arg0: i32) -> (i32, i32) {
    %c0_i32 = arith.constant 0 : i32
    %c0_i32_0 = arith.constant 0 : i32
    %c0_i32_1 = arith.constant 0 : i32
    return %c0_i32, %c0_i32_0 : i32, i32
  }
  func.func @transform_4(%arg0: i32) -> (i32, i32, i32) {
    %c0_i32 = arith.constant 0 : i32
    %c0_i32_0 = arith.constant 0 : i32
    %c0_i32_1 = arith.constant 0 : i32
    return %arg0, %c0_i32, %c0_i32_0 : i32, i32, i32
  }
}

</mosaic_0001>

<llo_original>
// kernel: attention_forward.1
$region0: #{attention_forward.1}
  #allocation0 [shape = 'u32[]', space=smem, size = 0x4, offset = 0x4, fixed_abs, tag = 'smem constant byte address 0x4 - core index']
  #allocation1 [shape = 'u32[72,128]{1,0:T(1,128)}', space=vmem, size = 0x9000, scoped, tag = 'internal scratch']
  %s0 = inlined_call_operand.vmem [shape: f32[2,8,32], index: 0, kind: input, shape index: {}]
  %s1 = inlined_call_operand.vmem [shape: f32[32,1536], index: 1, kind: input, shape index: {}]
  %s2 = inlined_call_operand.vmem [shape: f32[512,32], index: 2, kind: input, shape index: {}]
  %s3 = inlined_call_operand.vmem [shape: f32[1,32], index: 3, kind: input, shape index: {}]
  %s4 = inlined_call_operand.hbm [shape: f32[2,8,32], index: 4, kind: output, shape index: {}]
  %s5 = sld [smem:[#allocation0]]
  $region49: #{attention_forward.1} parent=0
    _
  %s7 = ssub.s32 1, %s5
  %s8 = scalar_select 0, %s7, %s5
  $region1: #{attention_forward.1} parent=0
    #allocation2 [shape = 'u8[8192]{0}', space=vmem, size = 0x2000, scoped, tag = 'output window, operand 0']
    #allocation3 [shape = 's32[2]{0}', space=sflag, size = 0x8, scoped, tag = 'scoped memory for attention_forward.1']
    %9 = vsyncpa [#allocation3], 0
    %s10 = scalar_lea.sflag [#allocation3], 1
    %11 = vsyncpa %s10, 0
    loop: start=0, step=1, limit=4
    $region2: #{attention_forward.1} parent=1 // loop_pre_header
      _
    $region3: #{attention_forward.1} parent=1 // loop_header
      %s13 = sphi 0, %s17
      %p14 = scmp.ge.s32.totalorder %s13, 4
      %s23 = sphi 0, %s25
      %s26 = sphi 0, %s23
      %s27 = sphi 0, %s26
      %s43 = sphi 0, %s27
      %s47 = sphi 0, %s47
      %s49 = sphi 0, %s47
      %s50 = sphi 0, %s49
      %s64 = sphi 0, %s50
      %s68 = sphi 0, %s68
      %s70 = sphi 0, %s68
      %s71 = sphi 0, %s70
      %s85 = sphi 0, %s71
      %s89 = sphi 0, %s89
      %s91 = sphi 0, %s89
      %s92 = sphi 0, %s91
      %s106 = sphi 0, %s92
      %s112 = sphi 0, %s114
      %s115 = sphi 0, %s112
      %s116 = sphi 0, %s115
      %s132 = sphi 0, %s116
    $region4: #{attention_forward.1} parent=1 // loop_header_branch
      %16 = sbr.rel (%p14) target = $region8
    $region5: #{attention_forward.1} parent=1 // loop_body
      %s18 = ssub.s32 %s13, 1
      %s19 = ssub.s32 %s13, 2
      %s20 = sadd.s32 %s13, 1
      %s21 = ssub.s32 %s13, %s20
      %p22 = scmp.eq.s32.totalorder %s21, 0
      %s24 = sadd.s32 %s23, 1
      %s25 = scalar_select %p22, %s23, %s24
      %p28 = pneg %p22
      %p29 = scmp.eq.s32.totalorder %s13, 1
      %p30 = por %p28, %p29
      %p31 = scmp.ne.s32.totalorder %s23, %s26
      %p32 = scmp.eq.s32.totalorder %s13, 0
      %p33 = por %p31, %p32
      %p34 = scmp.ne.s32.totalorder %s23, %s26
      %p35 = scmp.eq.s32.totalorder %s18, 1
      %p36 = por %p34, %p35
      %p37 = scmp.ne.s32.totalorder %s26, %s27
      %p38 = scmp.eq.s32.totalorder %s18, 0
      %p39 = por %p37, %p38
      %p40 = scmp.ne.s32.totalorder %s26, %s27
      %p41 = scmp.eq.s32.totalorder %s19, 1
      %p42 = por %p40, %p41
      %p44 = scmp.ne.s32.totalorder %s27, %s43
      %p45 = scmp.eq.s32.totalorder %s19, 0
      %p46 = por %p44, %p45
      %s48 = sadd.s32 %s47, 1
      %p51 = scmp.eq.s32.totalorder %s13, 1
      %p52 = scmp.ne.s32.totalorder %s47, %s49
      %p53 = scmp.eq.s32.totalorder %s13, 0
      %p54 = por %p52, %p53
      %p55 = scmp.ne.s32.totalorder %s47, %s49
      %p56 = scmp.eq.s32.totalorder %s18, 1
      %p57 = por %p55, %p56
      %p58 = scmp.ne.s32.totalorder %s49, %s50
      %p59 = scmp.eq.s32.totalorder %s18, 0
      %p60 = por %p58, %p59
      %p61 = scmp.ne.s32.totalorder %s49, %s50
      %p62 = scmp.eq.s32.totalorder %s19, 1
      %p63 = por %p61, %p62
      %p65 = scmp.ne.s32.totalorder %s50, %s64
      %p66 = scmp.eq.s32.totalorder %s19, 0
      %p67 = por %p65, %p66
      %s69 = sadd.s32 %s68, 1
      %p72 = scmp.eq.s32.totalorder %s13, 1
      %p73 = scmp.ne.s32.totalorder %s68, %s70
      %p74 = scmp.eq.s32.totalorder %s13, 0
      %p75 = por %p73, %p74
      %p76 = scmp.ne.s32.totalorder %s68, %s70
      %p77 = scmp.eq.s32.totalorder %s18, 1
      %p78 = por %p76, %p77
      %p79 = scmp.ne.s32.totalorder %s70, %s71
      %p80 = scmp.eq.s32.totalorder %s18, 0
      %p81 = por %p79, %p80
      %p82 = scmp.ne.s32.totalorder %s70, %s71
      %p83 = scmp.eq.s32.totalorder %s19, 1
      %p84 = por %p82, %p83
      %p86 = scmp.ne.s32.totalorder %s71, %s85
      %p87 = scmp.eq.s32.totalorder %s19, 0
      %p88 = por %p86, %p87
      %s90 = sadd.s32 %s89, 1
      %p93 = scmp.eq.s32.totalorder %s13, 1
      %p94 = scmp.ne.s32.totalorder %s89, %s91
      %p95 = scmp.eq.s32.totalorder %s13, 0
      %p96 = por %p94, %p95
      %p97 = scmp.ne.s32.totalorder %s89, %s91
      %p98 = scmp.eq.s32.totalorder %s18, 1
      %p99 = por %p97, %p98
      %p100 = scmp.ne.s32.totalorder %s91, %s92
      %p101 = scmp.eq.s32.totalorder %s18, 0
      %p102 = por %p100, %p101
      %p103 = scmp.ne.s32.totalorder %s91, %s92
      %p104 = scmp.eq.s32.totalorder %s19, 1
      %p105 = por %p103, %p104
      %p107 = scmp.ne.s32.totalorder %s92, %s106
      %p108 = scmp.eq.s32.totalorder %s19, 0
      %p109 = por %p107, %p108
      %s110 = ssub.s32 %s13, %s20
      %p111 = scmp.eq.s32.totalorder %s110, 0
      %s113 = sadd.s32 %s112, 1
      %s114 = scalar_select %p111, %s112, %s113
      %p117 = pneg %p111
      %p118 = scmp.eq.s32.totalorder %s13, 1
      %p119 = por %p117, %p118
      %p120 = scmp.ne.s32.totalorder %s112, %s115
      %p121 = scmp.eq.s32.totalorder %s13, 0
      %p122 = por %p120, %p121
      %p123 = scmp.ne.s32.totalorder %s112, %s115
      %p124 = scmp.eq.s32.totalorder %s18, 1
      %p125 = por %p123, %p124
      %p126 = scmp.ne.s32.totalorder %s115, %s116
      %p127 = scmp.eq.s32.totalorder %s18, 0
      %p128 = por %p126, %p127
      %p129 = scmp.ne.s32.totalorder %s115, %s116
      %p130 = scmp.eq.s32.totalorder %s19, 1
      %p131 = por %p129, %p130
      %p133 = scmp.ne.s32.totalorder %s116, %s132
      %p134 = scmp.eq.s32.totalorder %s19, 0
      %p135 = por %p133, %p134
      %p136 = scmp.le.s32.totalorder 1, %s13
      %p137 = scmp.lt.s32.totalorder %s13, 3
      %p138 = pnand %p136, %p137
      %p139 = pneg %p138
      // Predicated region
      $region9: #{attention_forward.1} parent=5 // pred_check
        _
      $region10: #{attention_forward.1} parent=5 // pred_check_branch
        %141 = sbr.rel (%p138) target = $region12
      $region11: #{attention_forward.1} parent=5 // pred_region
        %s142 = ssub.s32 %s13, 1
        // Predicated region
        $region13: #{attention_forward.1} parent=11 // pred_check
          %p143 = pneg %p60
        $region14: #{attention_forward.1} parent=11 // pred_check_branch
          %145 = sbr.rel (%p143) target = $region16
        $region15: #{attention_forward.1} parent=11 // pred_region
          _
        $region16: #{attention_forward.1} parent=11 // pred_fallthru
          _
        // Predicated region
        $region17: #{attention_forward.1} parent=11 // pred_check
          %p146 = pneg %p81
        $region18: #{attention_forward.1} parent=11 // pred_check_branch
          %148 = sbr.rel (%p146) target = $region20
        $region19: #{attention_forward.1} parent=11 // pred_region
          _
        $region20: #{attention_forward.1} parent=11 // pred_fallthru
          _
        // Predicated region
        $region21: #{attention_forward.1} parent=11 // pred_check
          %p149 = pneg %p102
        $region22: #{attention_forward.1} parent=11 // pred_check_branch
          %151 = sbr.rel (%p149) target = $region24
        $region23: #{attention_forward.1} parent=11 // pred_region
          _
        $region24: #{attention_forward.1} parent=11 // pred_fallthru
          _
      $region12: #{attention_forward.1} parent=5 // pred_fallthru
        _
      %p152 = scmp.lt.s32.totalorder %s13, 2
      // Predicated region
      $region25: #{attention_forward.1} parent=5 // pred_check
        %p153 = pneg %p152
      $region26: #{attention_forward.1} parent=5 // pred_check_branch
        %155 = sbr.rel (%p153) target = $region28
      $region27: #{attention_forward.1} parent=5 // pred_region
        // Predicated region
        $region29: #{attention_forward.1} parent=27 // pred_check
          %p156 = pneg %p33
        $region30: #{attention_forward.1} parent=27 // pred_check_branch
          %158 = sbr.rel (%p156) target = $region32
        $region31: #{attention_forward.1} parent=27 // pred_region
          %p159 = scmp.lt.s32.totalorder %s13, 1
          %s160 = scalar_select %p159, %s13, 1
          %s161 = smul.addr %s160, 8
          %s162 = scalar_lea.vmem %s0, %s161
        $region32: #{attention_forward.1} parent=27 // pred_fallthru
          _
      $region28: #{attention_forward.1} parent=5 // pred_fallthru
        _
      %p163 = scmp.le.s32.totalorder 1, %s13
      %p164 = scmp.lt.s32.totalorder %s13, 3
      %p165 = pnand %p163, %p164
      %p166 = pneg %p165
      // Predicated region
      $region33: #{attention_forward.1} parent=5 // pred_check
        _
      $region34: #{attention_forward.1} parent=5 // pred_check_branch
        %168 = sbr.rel (%p165) target = $region36
      $region35: #{attention_forward.1} parent=5 // pred_region
        %s169 = ssub.s32 %s13, 1
        %p170 = scmp.lt.s32.totalorder %s18, 1
        %s171 = scalar_select %p170, %s18, 1
        %s172 = smul.addr %s171, 8
        %s173 = scalar_lea.vmem %s0, %s172
        %p174 = pneg %p39
        %p175 = pneg %p36
        %p176 = pneg %p60
        %p177 = pneg %p57
        %p178 = pneg %p81
        %p179 = pneg %p78
        %p180 = pneg %p102
        %p181 = pneg %p99
        %p182 = pneg %p128
        %p183 = pneg %p125
        %s184 = sand.u32 %s115, 1
        %s185 = scalar_lea.sflag [#allocation3], %s184
        %s186 = sand.u32 %s115, 1
        %s187 = smul.addr %s186, 8
        %s188 = scalar_lea.vmem [#allocation2], %s187
        %p189 = scmp.lt.s32.totalorder %s18, 1
        %s190 = scalar_select %p189, %s18, 1
        %s191 = smul.addr %s190, 8
        %s192 = scalar_lea.vmem %s0, %s191
        %v193 = vld [vmem:[%s192] sm:$0xff]
        %v194 = vld [vmem:[%s1] sm:$0xff]
        %v195 = vld [vmem:[%s1 + $0x8] sm:$0xff]
        %v196 = vld [vmem:[%s1 + $0x10] sm:$0xff]
        %v197 = vld [vmem:[%s1 + $0x18] sm:$0xff]
        %v198 = vld [vmem:[%s1 + $0x20] sm:$0xff]
        %v199 = vld [vmem:[%s1 + $0x28] sm:$0xff]
        %v200 = vld [vmem:[%s1 + $0x30] sm:$0xff]
        %v201 = vld [vmem:[%s1 + $0x38] sm:$0xff]
        %v202 = vld [vmem:[%s1 + $0x40] sm:$0xff]
        %v203 = vld [vmem:[%s1 + $0x48] sm:$0xff]
        %v204 = vld [vmem:[%s1 + $0x50] sm:$0xff]
        %v205 = vld [vmem:[%s1 + $0x58] sm:$0xff]
        %v206 = vld [vmem:[%s1 + $0x60] sm:$0xff]
        %v207 = vld [vmem:[%s1 + $0x68] sm:$0xff]
        %v208 = vld [vmem:[%s1 + $0x70] sm:$0xff]
        %v209 = vld [vmem:[%s1 + $0x78] sm:$0xff]
        %v210 = vld [vmem:[%s1 + $0x80] sm:$0xff]
        %v211 = vld [vmem:[%s1 + $0x88] sm:$0xff]
        %v212 = vld [vmem:[%s1 + $0x90] sm:$0xff]
        %v213 = vld [vmem:[%s1 + $0x98] sm:$0xff]
        %v214 = vld [vmem:[%s1 + $0xa0] sm:$0xff]
        %v215 = vld [vmem:[%s1 + $0xa8] sm:$0xff]
        %v216 = vld [vmem:[%s1 + $0xb0] sm:$0xff]
        %v217 = vld [vmem:[%s1 + $0xb8] sm:$0xff]
        %v218 = vld [vmem:[%s1 + $0xc0] sm:$0xff]
        %v219 = vld [vmem:[%s1 + $0xc8] sm:$0xff]
        %v220 = vld [vmem:[%s1 + $0xd0] sm:$0xff]
        %v221 = vld [vmem:[%s1 + $0xd8] sm:$0xff]
        %v222 = vld [vmem:[%s1 + $0xe0] sm:$0xff]
        %v223 = vld [vmem:[%s1 + $0xe8] sm:$0xff]
        %v224 = vld [vmem:[%s1 + $0xf0] sm:$0xff]
        %v225 = vld [vmem:[%s1 + $0xf8] sm:$0xff]
        %v226 = vld [vmem:[%s1 + $0x100] sm:$0xff]
        %v227 = vld [vmem:[%s1 + $0x108] sm:$0xff]
        %v228 = vld [vmem:[%s1 + $0x110] sm:$0xff]
        %v229 = vld [vmem:[%s1 + $0x118] sm:$0xff]
        %v230 = vld [vmem:[%s1 + $0x120] sm:$0xff]
        %v231 = vld [vmem:[%s1 + $0x128] sm:$0xff]
        %v232 = vld [vmem:[%s1 + $0x130] sm:$0xff]
        %v233 = vld [vmem:[%s1 + $0x138] sm:$0xff]
        %v234 = vld [vmem:[%s1 + $0x140] sm:$0xff]
        %v235 = vld [vmem:[%s1 + $0x148] sm:$0xff]
        %v236 = vld [vmem:[%s1 + $0x150] sm:$0xff]
        %v237 = vld [vmem:[%s1 + $0x158] sm:$0xff]
        %v238 = vld [vmem:[%s1 + $0x160] sm:$0xff]
        %v239 = vld [vmem:[%s1 + $0x168] sm:$0xff]
        %v240 = vld [vmem:[%s1 + $0x170] sm:$0xff]
        %v241 = vld [vmem:[%s1 + $0x178] sm:$0xff]
        %vm242 = vcmask 261120
        %v244 = vsel %vm242, %v193, 0
        %246 = vmatpush.msra.mxu0 0.0
        %247 = vmatpush.msra.mxu0 0.0
        %248 = vmatpush.msra.mxu0 0.0
        %249 = vmatpush.msra.mxu0 0.0
        %250 = vmatpush.msra.mxu0 0.0
        %251 = vmatpush.msra.mxu0 0.0
        %252 = vmatpush.msra.mxu0 0.0
        %253 = vmatpush.msra.mxu0 0.0
        %254 = vmatpush.msra.mxu0 0.0
        %255 = vmatpush.msra.mxu0 0.0
        %256 = vmatpush.msra.mxu0 0.0
        %257 = vmatpush.msra.mxu0 0.0
        %258 = vmatpush.msra.mxu0 %v230
        %259 = vmatpush.msra.mxu0 %v218
        %260 = vmatpush.msra.mxu0 %v206
        %261 = vmatpush.msra.mxu0 %v194
        %262 = vmatmul.f32.gmra.mxu0 %v244
        %v263 = vpop.f32.mrf.mxu0
        %v264 = vadd.f32 0.0, %v263
        %265 = vdwg.mxu0
        %266 = vmatpush.msra.mxu0 0.0
        %267 = vmatpush.msra.mxu0 0.0
        %268 = vmatpush.msra.mxu0 0.0
        %269 = vmatpush.msra.mxu0 0.0
        %270 = vmatpush.msra.mxu0 0.0
        %271 = vmatpush.msra.mxu0 0.0
        %272 = vmatpush.msra.mxu0 0.0
        %273 = vmatpush.msra.mxu0 0.0
        %274 = vmatpush.msra.mxu0 0.0
        %275 = vmatpush.msra.mxu0 0.0
        %276 = vmatpush.msra.mxu0 0.0
        %277 = vmatpush.msra.mxu0 0.0
        %278 = vmatpush.msra.mxu0 %v231
        %279 = vmatpush.msra.mxu0 %v219
        %280 = vmatpush.msra.mxu0 %v207
        %281 = vmatpush.msra.mxu0 %v195
        %282 = vmatmul.f32.gmra.mxu0 %v244
        %v283 = vpop.f32.mrf.mxu0
        %v284 = vadd.f32 0.0, %v283
        %285 = vdwg.mxu0
        %286 = vmatpush.msra.mxu0 0.0
        %287 = vmatpush.msra.mxu0 0.0
        %288 = vmatpush.msra.mxu0 0.0
        %289 = vmatpush.msra.mxu0 0.0
        %290 = vmatpush.msra.mxu0 0.0
        %291 = vmatpush.msra.mxu0 0.0
        %292 = vmatpush.msra.mxu0 0.0
        %293 = vmatpush.msra.mxu0 0.0
        %294 = vmatpush.msra.mxu0 0.0
        %295 = vmatpush.msra.mxu0 0.0
        %296 = vmatpush.msra.mxu0 0.0
        %297 = vmatpush.msra.mxu0 0.0
        %298 = vmatpush.msra.mxu0 %v232
        %299 = vmatpush.msra.mxu0 %v220
        %300 = vmatpush.msra.mxu0 %v208
        %301 = vmatpush.msra.mxu0 %v196
        %302 = vmatmul.f32.gmra.mxu0 %v244
        %v303 = vpop.f32.mrf.mxu0
        %v304 = vadd.f32 0.0, %v303
        %305 = vdwg.mxu0
        %306 = vmatpush.msra.mxu0 0.0
        %307 = vmatpush.msra.mxu0 0.0
        %308 = vmatpush.msra.mxu0 0.0
        %309 = vmatpush.msra.mxu0 0.0
        %310 = vmatpush.msra.mxu0 0.0
        %311 = vmatpush.msra.mxu0 0.0
        %312 = vmatpush.msra.mxu0 0.0
        %313 = vmatpush.msra.mxu0 0.0
        %314 = vmatpush.msra.mxu0 0.0
        %315 = vmatpush.msra.mxu0 0.0
        %316 = vmatpush.msra.mxu0 0.0
        %317 = vmatpush.msra.mxu0 0.0
        %318 = vmatpush.msra.mxu0 %v233
        %319 = vmatpush.msra.mxu0 %v221
        %320 = vmatpush.msra.mxu0 %v209
        %321 = vmatpush.msra.mxu0 %v197
        %322 = vmatmul.f32.gmra.mxu0 %v244
        %v323 = vpop.f32.mrf.mxu0
        %v324 = vadd.f32 0.0, %v323
        %325 = vdwg.mxu0
        %326 = vmatpush.msra.mxu0 0.0
        %327 = vmatpush.msra.mxu0 0.0
        %328 = vmatpush.msra.mxu0 0.0
        %329 = vmatpush.msra.mxu0 0.0
        %330 = vmatpush.msra.mxu0 0.0
        %331 = vmatpush.msra.mxu0 0.0
        %332 = vmatpush.msra.mxu0 0.0
        %333 = vmatpush.msra.mxu0 0.0
        %334 = vmatpush.msra.mxu0 0.0
        %335 = vmatpush.msra.mxu0 0.0
        %336 = vmatpush.msra.mxu0 0.0
        %337 = vmatpush.msra.mxu0 0.0
        %338 = vmatpush.msra.mxu0 %v234
        %339 = vmatpush.msra.mxu0 %v222
        %340 = vmatpush.msra.mxu0 %v210
        %341 = vmatpush.msra.mxu0 %v198
        %342 = vmatmul.f32.gmra.mxu0 %v244
        %v343 = vpop.f32.mrf.mxu0
        %v344 = vadd.f32 0.0, %v343
        %345 = vdwg.mxu0
        %346 = vmatpush.msra.mxu0 0.0
        %347 = vmatpush.msra.mxu0 0.0
        %348 = vmatpush.msra.mxu0 0.0
        %349 = vmatpush.msra.mxu0 0.0
        %350 = vmatpush.msra.mxu0 0.0
        %351 = vmatpush.msra.mxu0 0.0
        %352 = vmatpush.msra.mxu0 0.0
        %353 = vmatpush.msra.mxu0 0.0
        %354 = vmatpush.msra.mxu0 0.0
        %355 = vmatpush.msra.mxu0 0.0
        %356 = vmatpush.msra.mxu0 0.0
        %357 = vmatpush.msra.mxu0 0.0
        %358 = vmatpush.msra.mxu0 %v235
        %359 = vmatpush.msra.mxu0 %v223
        %360 = vmatpush.msra.mxu0 %v211
        %361 = vmatpush.msra.mxu0 %v199
        %362 = vmatmul.f32.gmra.mxu0 %v244
        %v363 = vpop.f32.mrf.mxu0
        %v364 = vadd.f32 0.0, %v363
        %365 = vdwg.mxu0
        %366 = vmatpush.msra.mxu0 0.0
        %367 = vmatpush.msra.mxu0 0.0
        %368 = vmatpush.msra.mxu0 0.0
        %369 = vmatpush.msra.mxu0 0.0
        %370 = vmatpush.msra.mxu0 0.0
        %371 = vmatpush.msra.mxu0 0.0
        %372 = vmatpush.msra.mxu0 0.0
        %373 = vmatpush.msra.mxu0 0.0
        %374 = vmatpush.msra.mxu0 0.0
        %375 = vmatpush.msra.mxu0 0.0
        %376 = vmatpush.msra.mxu0 0.0
        %377 = vmatpush.msra.mxu0 0.0
        %378 = vmatpush.msra.mxu0 %v236
        %379 = vmatpush.msra.mxu0 %v224
        %380 = vmatpush.msra.mxu0 %v212
        %381 = vmatpush.msra.mxu0 %v200
        %382 = vmatmul.f32.gmra.mxu0 %v244
        %v383 = vpop.f32.mrf.mxu0
        %v384 = vadd.f32 0.0, %v383
        %385 = vdwg.mxu0
        %386 = vmatpush.msra.mxu0 0.0
        %387 = vmatpush.msra.mxu0 0.0
        %388 = vmatpush.msra.mxu0 0.0
        %389 = vmatpush.msra.mxu0 0.0
        %390 = vmatpush.msra.mxu0 0.0
        %391 = vmatpush.msra.mxu0 0.0
        %392 = vmatpush.msra.mxu0 0.0
        %393 = vmatpush.msra.mxu0 0.0
        %394 = vmatpush.msra.mxu0 0.0
        %395 = vmatpush.msra.mxu0 0.0
        %396 = vmatpush.msra.mxu0 0.0
        %397 = vmatpush.msra.mxu0 0.0
        %398 = vmatpush.msra.mxu0 %v237
        %399 = vmatpush.msra.mxu0 %v225
        %400 = vmatpush.msra.mxu0 %v213
        %401 = vmatpush.msra.mxu0 %v201
        %402 = vmatmul.f32.gmra.mxu0 %v244
        %v403 = vpop.f32.mrf.mxu0
        %v404 = vadd.f32 0.0, %v403
        %405 = vdwg.mxu0
        %406 = vmatpush.msra.mxu0 0.0
        %407 = vmatpush.msra.mxu0 0.0
        %408 = vmatpush.msra.mxu0 0.0
        %409 = vmatpush.msra.mxu0 0.0
        %410 = vmatpush.msra.mxu0 0.0
        %411 = vmatpush.msra.mxu0 0.0
        %412 = vmatpush.msra.mxu0 0.0
        %413 = vmatpush.msra.mxu0 0.0
        %414 = vmatpush.msra.mxu0 0.0
        %415 = vmatpush.msra.mxu0 0.0
        %416 = vmatpush.msra.mxu0 0.0
        %417 = vmatpush.msra.mxu0 0.0
        %418 = vmatpush.msra.mxu0 %v238
        %419 = vmatpush.msra.mxu0 %v226
        %420 = vmatpush.msra.mxu0 %v214
        %421 = vmatpush.msra.mxu0 %v202
        %422 = vmatmul.f32.gmra.mxu0 %v244
        %v423 = vpop.f32.mrf.mxu0
        %v424 = vadd.f32 0.0, %v423
        %425 = vdwg.mxu0
        %426 = vmatpush.msra.mxu0 0.0
        %427 = vmatpush.msra.mxu0 0.0
        %428 = vmatpush.msra.mxu0 0.0
        %429 = vmatpush.msra.mxu0 0.0
        %430 = vmatpush.msra.mxu0 0.0
        %431 = vmatpush.msra.mxu0 0.0
        %432 = vmatpush.msra.mxu0 0.0
        %433 = vmatpush.msra.mxu0 0.0
        %434 = vmatpush.msra.mxu0 0.0
        %435 = vmatpush.msra.mxu0 0.0
        %436 = vmatpush.msra.mxu0 0.0
        %437 = vmatpush.msra.mxu0 0.0
        %438 = vmatpush.msra.mxu0 %v239
        %439 = vmatpush.msra.mxu0 %v227
        %440 = vmatpush.msra.mxu0 %v215
        %441 = vmatpush.msra.mxu0 %v203
        %442 = vmatmul.f32.gmra.mxu0 %v244
        %v443 = vpop.f32.mrf.mxu0
        %v444 = vadd.f32 0.0, %v443
        %445 = vdwg.mxu0
        %446 = vmatpush.msra.mxu0 0.0
        %447 = vmatpush.msra.mxu0 0.0
        %448 = vmatpush.msra.mxu0 0.0
        %449 = vmatpush.msra.mxu0 0.0
        %450 = vmatpush.msra.mxu0 0.0
        %451 = vmatpush.msra.mxu0 0.0
        %452 = vmatpush.msra.mxu0 0.0
        %453 = vmatpush.msra.mxu0 0.0
        %454 = vmatpush.msra.mxu0 0.0
        %455 = vmatpush.msra.mxu0 0.0
        %456 = vmatpush.msra.mxu0 0.0
        %457 = vmatpush.msra.mxu0 0.0
        %458 = vmatpush.msra.mxu0 %v240
        %459 = vmatpush.msra.mxu0 %v228
        %460 = vmatpush.msra.mxu0 %v216
        %461 = vmatpush.msra.mxu0 %v204
        %462 = vmatmul.f32.gmra.mxu0 %v244
        %v463 = vpop.f32.mrf.mxu0
        %v464 = vadd.f32 0.0, %v463
        %465 = vdwg.mxu0
        %466 = vmatpush.msra.mxu0 0.0
        %467 = vmatpush.msra.mxu0 0.0
        %468 = vmatpush.msra.mxu0 0.0
        %469 = vmatpush.msra.mxu0 0.0
        %470 = vmatpush.msra.mxu0 0.0
        %471 = vmatpush.msra.mxu0 0.0
        %472 = vmatpush.msra.mxu0 0.0
        %473 = vmatpush.msra.mxu0 0.0
        %474 = vmatpush.msra.mxu0 0.0
        %475 = vmatpush.msra.mxu0 0.0
        %476 = vmatpush.msra.mxu0 0.0
        %477 = vmatpush.msra.mxu0 0.0
        %478 = vmatpush.msra.mxu0 %v241
        %479 = vmatpush.msra.mxu0 %v229
        %480 = vmatpush.msra.mxu0 %v217
        %481 = vmatpush.msra.mxu0 %v205
        %482 = vmatmul.f32.gmra.mxu0 %v244
        %v483 = vpop.f32.mrf.mxu0
        %v484 = vadd.f32 0.0, %v483
        %485 = vdwg.mxu0
        %vm486 = vcmask 523264
        %v488 = vsel %vm486, %v264, 0
        %v491 = vsel %vm486, %v344, 0
        %493 = vmatpush.xpose.msra.mxu0 0.0
        %494 = vmatpush.xpose.msra.mxu0 0.0
        %495 = vmatpush.xpose.msra.mxu0 0.0
        %496 = vmatpush.xpose.msra.mxu0 0.0
        %497 = vmatpush.xpose.msra.mxu0 0.0
        %498 = vmatpush.xpose.msra.mxu0 0.0
        %499 = vmatpush.xpose.msra.mxu0 0.0
        %500 = vmatpush.xpose.msra.mxu0 0.0
        %501 = vmatpush.xpose.msra.mxu0 0.0
        %502 = vmatpush.xpose.msra.mxu0 0.0
        %503 = vmatpush.xpose.msra.mxu0 0.0
        %504 = vmatpush.xpose.msra.mxu0 0.0
        %505 = vmatpush.xpose.msra.mxu0 0.0
        %506 = vmatpush.xpose.msra.mxu0 0.0
        %507 = vmatpush.xpose.msra.mxu0 0.0
        %508 = vmatpush.xpose.msra.mxu0 %v491
        %509 = vmatmul.f32.gmra.mxu0 %v488
        %v510 = vpop.f32.mrf.mxu0
        %v511 = vadd.f32 0.0, %v510
        %512 = vdwg.mxu0
        %v513 = vmul.f32 %v511, 0.125
        %vm514 = vcmask 64512
        %v515 = vsel %vm514, %v513, -inf
        %516 = vmax.xlane.f32.xlu0 %v515
        %v517 = vpop.xlane.xlu0 %516
        %v518 = vsub.f32 %v513, %v517
        %v519 = vmul.f32 %v518, 1.442695
        %v520 = vpow.pop %v519
        %v521 = vsel %vm514, %v520, 0.0
        %522 = vadd.xlane.f32.xlu0 %v521
        %v523 = vpop.xlane.xlu0 %522
        %v524 = vrcp.pop %v523
        %v525 = vmul.f32 %v523, %v524
        %v526 = vsub.f32 1.0, %v525
        %v527 = vmul.f32 %v524, %v526
        %v528 = vadd.f32 %v524, %v527
        %vm529 = vweird.f32 %v523
        %vm530 = vweird.f32 %v524
        %vm531 = vmor %vm529, %vm530
        %v532 = vsel %vm531, %v524, %v528
        %v533 = vand.u32 2147483647, %v523
        %vm534 = vcmp.eq.f32.partialorder %v533, 8.507059e+37
        %v535 = vand.u32 %v523, 2147483648
        %v536 = vor.u32 1.1754944e-38, %v535
        %v537 = vsel %vm534, %v536, %v532
        %v538 = vmul.f32 %v520, %v537
        %v540 = vsel %vm514, %v538, 0
        %542 = vmatpush.msra.mxu0 0.0
        %543 = vmatpush.msra.mxu0 0.0
        %544 = vmatpush.msra.mxu0 0.0
        %545 = vmatpush.msra.mxu0 0.0
        %546 = vmatpush.msra.mxu0 0.0
        %547 = vmatpush.msra.mxu0 0.0
        %548 = vmatpush.msra.mxu0 0.0
        %549 = vmatpush.msra.mxu0 0.0
        %550 = vmatpush.msra.mxu0 0.0
        %551 = vmatpush.msra.mxu0 0.0
        %552 = vmatpush.msra.mxu0 0.0
        %553 = vmatpush.msra.mxu0 0.0
        %554 = vmatpush.msra.mxu0 0.0
        %555 = vmatpush.msra.mxu0 0.0
        %556 = vmatpush.msra.mxu0 0.0
        %557 = vmatpush.msra.mxu0 %v424
        %558 = vmatmul.f32.gmra.mxu0 %v540
        %v559 = vpop.f32.mrf.mxu0
        %v560 = vadd.f32 0.0, %v559
        %561 = vdwg.mxu0
        %v562 = vld [vmem:[%s2] sm:$0xff]
        %v563 = vld [vmem:[%s2 + $0x8] sm:$0xff]
        %v564 = vld [vmem:[%s2 + $0x10] sm:$0xff]
        %v565 = vld [vmem:[%s2 + $0x18] sm:$0xff]
        %v566 = vld [vmem:[%s2 + $0x20] sm:$0xff]
        %v567 = vld [vmem:[%s2 + $0x28] sm:$0xff]
        %v568 = vld [vmem:[%s2 + $0x30] sm:$0xff]
        %v569 = vld [vmem:[%s2 + $0x38] sm:$0xff]
        %570 = vrot.lane.b32.xlu0 %v264, 64
        %v571 = vpop.permute.xlu0 %570
        %572 = vrot.lane.b32.xlu0 %v344, 64
        %v573 = vpop.permute.xlu0 %572
        %v574 = vsel %vm486, %v571, 0
        %v576 = vsel %vm486, %v573, 0
        %578 = vmatpush.xpose.msra.mxu0 0.0
        %579 = vmatpush.xpose.msra.mxu0 0.0
        %580 = vmatpush.xpose.msra.mxu0 0.0
        %581 = vmatpush.xpose.msra.mxu0 0.0
        %582 = vmatpush.xpose.msra.mxu0 0.0
        %583 = vmatpush.xpose.msra.mxu0 0.0
        %584 = vmatpush.xpose.msra.mxu0 0.0
        %585 = vmatpush.xpose.msra.mxu0 0.0
        %586 = vmatpush.xpose.msra.mxu0 0.0
        %587 = vmatpush.xpose.msra.mxu0 0.0
        %588 = vmatpush.xpose.msra.mxu0 0.0
        %589 = vmatpush.xpose.msra.mxu0 0.0
        %590 = vmatpush.xpose.msra.mxu0 0.0
        %591 = vmatpush.xpose.msra.mxu0 0.0
        %592 = vmatpush.xpose.msra.mxu0 0.0
        %593 = vmatpush.xpose.msra.mxu0 %v576
        %594 = vmatmul.f32.gmra.mxu0 %v574
        %v595 = vpop.f32.mrf.mxu0
        %v596 = vadd.f32 0.0, %v595
        %597 = vdwg.mxu0
        %v598 = vmul.f32 %v596, 0.125
        %v599 = vsel %vm514, %v598, -inf
        %600 = vmax.xlane.f32.xlu0 %v599
        %v601 = vpop.xlane.xlu0 %600
        %v602 = vsub.f32 %v598, %v601
        %v603 = vmul.f32 %v602, 1.442695
        %v604 = vpow.pop %v603
        %v605 = vsel %vm514, %v604, 0.0
        %606 = vadd.xlane.f32.xlu0 %v605
        %v607 = vpop.xlane.xlu0 %606
        %v608 = vrcp.pop %v607
        %v609 = vmul.f32 %v607, %v608
        %v610 = vsub.f32 1.0, %v609
        %v611 = vmul.f32 %v608, %v610
        %v612 = vadd.f32 %v608, %v611
        %vm613 = vweird.f32 %v607
        %vm614 = vweird.f32 %v608
        %vm615 = vmor %vm613, %vm614
        %v616 = vsel %vm615, %v608, %v612
        %v617 = vand.u32 2147483647, %v607
        %vm618 = vcmp.eq.f32.partialorder %v617, 8.507059e+37
        %v619 = vand.u32 %v607, 2147483648
        %v620 = vor.u32 1.1754944e-38, %v619
        %v621 = vsel %vm618, %v620, %v616
        %v622 = vmul.f32 %v604, %v621
        %624 = vrot.lane.b32.xlu0 %v424, 64
        %v625 = vpop.permute.xlu0 %624
        %v628 = vsel %vm514, %v622, 0
        %630 = vmatpush.msra.mxu0 0.0
        %631 = vmatpush.msra.mxu0 0.0
        %632 = vmatpush.msra.mxu0 0.0
        %633 = vmatpush.msra.mxu0 0.0
        %634 = vmatpush.msra.mxu0 0.0
        %635 = vmatpush.msra.mxu0 0.0
        %636 = vmatpush.msra.mxu0 0.0
        %637 = vmatpush.msra.mxu0 0.0
        %638 = vmatpush.msra.mxu0 0.0
        %639 = vmatpush.msra.mxu0 0.0
        %640 = vmatpush.msra.mxu0 0.0
        %641 = vmatpush.msra.mxu0 0.0
        %642 = vmatpush.msra.mxu0 0.0
        %643 = vmatpush.msra.mxu0 0.0
        %644 = vmatpush.msra.mxu0 0.0
        %645 = vmatpush.msra.mxu0 %v625
        %646 = vmatmul.f32.gmra.mxu0 %v628
        %v647 = vpop.f32.mrf.mxu0
        %v648 = vadd.f32 0.0, %v647
        %649 = vdwg.mxu0
        %v650 = vld [vmem:[%s2 + $0x40] sm:$0xff]
        %v651 = vld [vmem:[%s2 + $0x48] sm:$0xff]
        %v652 = vld [vmem:[%s2 + $0x50] sm:$0xff]
        %v653 = vld [vmem:[%s2 + $0x58] sm:$0xff]
        %v654 = vld [vmem:[%s2 + $0x60] sm:$0xff]
        %v655 = vld [vmem:[%s2 + $0x68] sm:$0xff]
        %v656 = vld [vmem:[%s2 + $0x70] sm:$0xff]
        %v657 = vld [vmem:[%s2 + $0x78] sm:$0xff]
        %v659 = vsel %vm486, %v648, 0
        %661 = vmatpush.msra.mxu0 0.0
        %662 = vmatpush.msra.mxu0 0.0
        %663 = vmatpush.msra.mxu0 0.0
        %664 = vmatpush.msra.mxu0 0.0
        %665 = vmatpush.msra.mxu0 0.0
        %666 = vmatpush.msra.mxu0 0.0
        %667 = vmatpush.msra.mxu0 0.0
        %668 = vmatpush.msra.mxu0 0.0
        %669 = vmatpush.msra.mxu0 %v657
        %670 = vmatpush.msra.mxu0 %v656
        %671 = vmatpush.msra.mxu0 %v655
        %672 = vmatpush.msra.mxu0 %v654
        %673 = vmatpush.msra.mxu0 %v653
        %674 = vmatpush.msra.mxu0 %v652
        %675 = vmatpush.msra.mxu0 %v651
        %676 = vmatpush.msra.mxu0 %v650
        %677 = vmatmul.f32.gmra.mxu0 %v659
        %v678 = vpop.f32.mrf.mxu0
        %v679 = vadd.f32 0.0, %v678
        %680 = vdwg.mxu0
        %v682 = vsel %vm486, %v560, 0
        %684 = vmatpush.msra.mxu0 0.0
        %685 = vmatpush.msra.mxu0 0.0
        %686 = vmatpush.msra.mxu0 0.0
        %687 = vmatpush.msra.mxu0 0.0
        %688 = vmatpush.msra.mxu0 0.0
        %689 = vmatpush.msra.mxu0 0.0
        %690 = vmatpush.msra.mxu0 0.0
        %691 = vmatpush.msra.mxu0 0.0
        %692 = vmatpush.msra.mxu0 %v569
        %693 = vmatpush.msra.mxu0 %v568
        %694 = vmatpush.msra.mxu0 %v567
        %695 = vmatpush.msra.mxu0 %v566
        %696 = vmatpush.msra.mxu0 %v565
        %697 = vmatpush.msra.mxu0 %v564
        %698 = vmatpush.msra.mxu0 %v563
        %699 = vmatpush.msra.mxu0 %v562
        %700 = vmatmul.f32.gmra.mxu0 %v682
        %v701 = vpop.f32.mrf.mxu0
        %v702 = vadd.f32 %v679, %v701
        %703 = vdwg.mxu0
        %v705 = vsel %vm486, %v284, 0
        %v708 = vsel %vm486, %v364, 0
        %710 = vmatpush.xpose.msra.mxu0 0.0
        %711 = vmatpush.xpose.msra.mxu0 0.0
        %712 = vmatpush.xpose.msra.mxu0 0.0
        %713 = vmatpush.xpose.msra.mxu0 0.0
        %714 = vmatpush.xpose.msra.mxu0 0.0
        %715 = vmatpush.xpose.msra.mxu0 0.0
        %716 = vmatpush.xpose.msra.mxu0 0.0
        %717 = vmatpush.xpose.msra.mxu0 0.0
        %718 = vmatpush.xpose.msra.mxu0 0.0
        %719 = vmatpush.xpose.msra.mxu0 0.0
        %720 = vmatpush.xpose.msra.mxu0 0.0
        %721 = vmatpush.xpose.msra.mxu0 0.0
        %722 = vmatpush.xpose.msra.mxu0 0.0
        %723 = vmatpush.xpose.msra.mxu0 0.0
        %724 = vmatpush.xpose.msra.mxu0 0.0
        %725 = vmatpush.xpose.msra.mxu0 %v708
        %726 = vmatmul.f32.gmra.mxu0 %v705
        %v727 = vpop.f32.mrf.mxu0
        %v728 = vadd.f32 0.0, %v727
        %729 = vdwg.mxu0
        %v730 = vmul.f32 %v728, 0.125
        %v731 = vsel %vm514, %v730, -inf
        %732 = vmax.xlane.f32.xlu0 %v731
        %v733 = vpop.xlane.xlu0 %732
        %v734 = vsub.f32 %v730, %v733
        %v735 = vmul.f32 %v734, 1.442695
        %v736 = vpow.pop %v735
        %v737 = vsel %vm514, %v736, 0.0
        %738 = vadd.xlane.f32.xlu0 %v737
        %v739 = vpop.xlane.xlu0 %738
        %v740 = vrcp.pop %v739
        %v741 = vmul.f32 %v739, %v740
        %v742 = vsub.f32 1.0, %v741
        %v743 = vmul.f32 %v740, %v742
        %v744 = vadd.f32 %v740, %v743
        %vm745 = vweird.f32 %v739
        %vm746 = vweird.f32 %v740
        %vm747 = vmor %vm745, %vm746
        %v748 = vsel %vm747, %v740, %v744
        %v749 = vand.u32 2147483647, %v739
        %vm750 = vcmp.eq.f32.partialorder %v749, 8.507059e+37
        %v751 = vand.u32 %v739, 2147483648
        %v752 = vor.u32 1.1754944e-38, %v751
        %v753 = vsel %vm750, %v752, %v748
        %v754 = vmul.f32 %v736, %v753
        %v756 = vsel %vm514, %v754, 0
        %758 = vmatpush.msra.mxu0 0.0
        %759 = vmatpush.msra.mxu0 0.0
        %760 = vmatpush.msra.mxu0 0.0
        %761 = vmatpush.msra.mxu0 0.0
        %762 = vmatpush.msra.mxu0 0.0
        %763 = vmatpush.msra.mxu0 0.0
        %764 = vmatpush.msra.mxu0 0.0
        %765 = vmatpush.msra.mxu0 0.0
        %766 = vmatpush.msra.mxu0 0.0
        %767 = vmatpush.msra.mxu0 0.0
        %768 = vmatpush.msra.mxu0 0.0
        %769 = vmatpush.msra.mxu0 0.0
        %770 = vmatpush.msra.mxu0 0.0
        %771 = vmatpush.msra.mxu0 0.0
        %772 = vmatpush.msra.mxu0 0.0
        %773 = vmatpush.msra.mxu0 %v444
        %774 = vmatmul.f32.gmra.mxu0 %v756
        %v775 = vpop.f32.mrf.mxu0
        %v776 = vadd.f32 0.0, %v775
        %777 = vdwg.mxu0
        %v778 = vld [vmem:[%s2 + $0x80] sm:$0xff]
        %v779 = vld [vmem:[%s2 + $0x88] sm:$0xff]
        %v780 = vld [vmem:[%s2 + $0x90] sm:$0xff]
        %v781 = vld [vmem:[%s2 + $0x98] sm:$0xff]
        %v782 = vld [vmem:[%s2 + $0xa0] sm:$0xff]
        %v783 = vld [vmem:[%s2 + $0xa8] sm:$0xff]
        %v784 = vld [vmem:[%s2 + $0xb0] sm:$0xff]
        %v785 = vld [vmem:[%s2 + $0xb8] sm:$0xff]
        %v787 = vsel %vm486, %v776, 0
        %789 = vmatpush.msra.mxu0 0.0
        %790 = vmatpush.msra.mxu0 0.0
        %791 = vmatpush.msra.mxu0 0.0
        %792 = vmatpush.msra.mxu0 0.0
        %793 = vmatpush.msra.mxu0 0.0
        %794 = vmatpush.msra.mxu0 0.0
        %795 = vmatpush.msra.mxu0 0.0
        %796 = vmatpush.msra.mxu0 0.0
        %797 = vmatpush.msra.mxu0 %v785
        %798 = vmatpush.msra.mxu0 %v784
        %799 = vmatpush.msra.mxu0 %v783
        %800 = vmatpush.msra.mxu0 %v782
        %801 = vmatpush.msra.mxu0 %v781
        %802 = vmatpush.msra.mxu0 %v780
        %803 = vmatpush.msra.mxu0 %v779
        %804 = vmatpush.msra.mxu0 %v778
        %805 = vmatmul.f32.gmra.mxu0 %v787
        %v806 = vpop.f32.mrf.mxu0
        %v807 = vadd.f32 0.0, %v806
        %808 = vdwg.mxu0
        %v809 = vadd.f32 %v702, %v807
        %810 = vrot.lane.b32.xlu0 %v284, 64
        %v811 = vpop.permute.xlu0 %810
        %812 = vrot.lane.b32.xlu0 %v364, 64
        %v813 = vpop.permute.xlu0 %812
        %v814 = vsel %vm486, %v811, 0
        %v816 = vsel %vm486, %v813, 0
        %818 = vmatpush.xpose.msra.mxu0 0.0
        %819 = vmatpush.xpose.msra.mxu0 0.0
        %820 = vmatpush.xpose.msra.mxu0 0.0
        %821 = vmatpush.xpose.msra.mxu0 0.0
        %822 = vmatpush.xpose.msra.mxu0 0.0
        %823 = vmatpush.xpose.msra.mxu0 0.0
        %824 = vmatpush.xpose.msra.mxu0 0.0
        %825 = vmatpush.xpose.msra.mxu0 0.0
        %826 = vmatpush.xpose.msra.mxu0 0.0
        %827 = vmatpush.xpose.msra.mxu0 0.0
        %828 = vmatpush.xpose.msra.mxu0 0.0
        %829 = vmatpush.xpose.msra.mxu0 0.0
        %830 = vmatpush.xpose.msra.mxu0 0.0
        %831 = vmatpush.xpose.msra.mxu0 0.0
        %832 = vmatpush.xpose.msra.mxu0 0.0
        %833 = vmatpush.xpose.msra.mxu0 %v816
        %834 = vmatmul.f32.gmra.mxu0 %v814
        %v835 = vpop.f32.mrf.mxu0
        %v836 = vadd.f32 0.0, %v835
        %837 = vdwg.mxu0
        %v838 = vmul.f32 %v836, 0.125
        %v839 = vsel %vm514, %v838, -inf
        %840 = vmax.xlane.f32.xlu0 %v839
        %v841 = vpop.xlane.xlu0 %840
        %v842 = vsub.f32 %v838, %v841
        %v843 = vmul.f32 %v842, 1.442695
        %v844 = vpow.pop %v843
        %v845 = vsel %vm514, %v844, 0.0
        %846 = vadd.xlane.f32.xlu0 %v845
        %v847 = vpop.xlane.xlu0 %846
        %v848 = vrcp.pop %v847
        %v849 = vmul.f32 %v847, %v848
        %v850 = vsub.f32 1.0, %v849
        %v851 = vmul.f32 %v848, %v850
        %v852 = vadd.f32 %v848, %v851
        %vm853 = vweird.f32 %v847
        %vm854 = vweird.f32 %v848
        %vm855 = vmor %vm853, %vm854
        %v856 = vsel %vm855, %v848, %v852
        %v857 = vand.u32 2147483647, %v847
        %vm858 = vcmp.eq.f32.partialorder %v857, 8.507059e+37
        %v859 = vand.u32 %v847, 2147483648
        %v860 = vor.u32 1.1754944e-38, %v859
        %v861 = vsel %vm858, %v860, %v856
        %v862 = vmul.f32 %v844, %v861
        %864 = vrot.lane.b32.xlu0 %v444, 64
        %v865 = vpop.permute.xlu0 %864
        %v868 = vsel %vm514, %v862, 0
        %870 = vmatpush.msra.mxu0 0.0
        %871 = vmatpush.msra.mxu0 0.0
        %872 = vmatpush.msra.mxu0 0.0
        %873 = vmatpush.msra.mxu0 0.0
        %874 = vmatpush.msra.mxu0 0.0
        %875 = vmatpush.msra.mxu0 0.0
        %876 = vmatpush.msra.mxu0 0.0
        %877 = vmatpush.msra.mxu0 0.0
        %878 = vmatpush.msra.mxu0 0.0
        %879 = vmatpush.msra.mxu0 0.0
        %880 = vmatpush.msra.mxu0 0.0
        %881 = vmatpush.msra.mxu0 0.0
        %882 = vmatpush.msra.mxu0 0.0
        %883 = vmatpush.msra.mxu0 0.0
        %884 = vmatpush.msra.mxu0 0.0
        %885 = vmatpush.msra.mxu0 %v865
        %886 = vmatmul.f32.gmra.mxu0 %v868
        %v887 = vpop.f32.mrf.mxu0
        %v888 = vadd.f32 0.0, %v887
        %889 = vdwg.mxu0
        %v890 = vld [vmem:[%s2 + $0xc0] sm:$0xff]
        %v891 = vld [vmem:[%s2 + $0xc8] sm:$0xff]
        %v892 = vld [vmem:[%s2 + $0xd0] sm:$0xff]
        %v893 = vld [vmem:[%s2 + $0xd8] sm:$0xff]
        %v894 = vld [vmem:[%s2 + $0xe0] sm:$0xff]
        %v895 = vld [vmem:[%s2 + $0xe8] sm:$0xff]
        %v896 = vld [vmem:[%s2 + $0xf0] sm:$0xff]
        %v897 = vld [vmem:[%s2 + $0xf8] sm:$0xff]
        %v899 = vsel %vm486, %v888, 0
        %901 = vmatpush.msra.mxu0 0.0
        %902 = vmatpush.msra.mxu0 0.0
        %903 = vmatpush.msra.mxu0 0.0
        %904 = vmatpush.msra.mxu0 0.0
        %905 = vmatpush.msra.mxu0 0.0
        %906 = vmatpush.msra.mxu0 0.0
        %907 = vmatpush.msra.mxu0 0.0
        %908 = vmatpush.msra.mxu0 0.0
        %909 = vmatpush.msra.mxu0 %v897
        %910 = vmatpush.msra.mxu0 %v896
        %911 = vmatpush.msra.mxu0 %v895
        %912 = vmatpush.msra.mxu0 %v894
        %913 = vmatpush.msra.mxu0 %v893
        %914 = vmatpush.msra.mxu0 %v892
        %915 = vmatpush.msra.mxu0 %v891
        %916 = vmatpush.msra.mxu0 %v890
        %917 = vmatmul.f32.gmra.mxu0 %v899
        %v918 = vpop.f32.mrf.mxu0
        %v919 = vadd.f32 0.0, %v918
        %920 = vdwg.mxu0
        %v921 = vadd.f32 %v809, %v919
        %v923 = vsel %vm486, %v304, 0
        %v926 = vsel %vm486, %v384, 0
        %928 = vmatpush.xpose.msra.mxu0 0.0
        %929 = vmatpush.xpose.msra.mxu0 0.0
        %930 = vmatpush.xpose.msra.mxu0 0.0
        %931 = vmatpush.xpose.msra.mxu0 0.0
        %932 = vmatpush.xpose.msra.mxu0 0.0
        %933 = vmatpush.xpose.msra.mxu0 0.0
        %934 = vmatpush.xpose.msra.mxu0 0.0
        %935 = vmatpush.xpose.msra.mxu0 0.0
        %936 = vmatpush.xpose.msra.mxu0 0.0
        %937 = vmatpush.xpose.msra.mxu0 0.0
        %938 = vmatpush.xpose.msra.mxu0 0.0
        %939 = vmatpush.xpose.msra.mxu0 0.0
        %940 = vmatpush.xpose.msra.mxu0 0.0
        %941 = vmatpush.xpose.msra.mxu0 0.0
        %942 = vmatpush.xpose.msra.mxu0 0.0
        %943 = vmatpush.xpose.msra.mxu0 %v926
        %944 = vmatmul.f32.gmra.mxu0 %v923
        %v945 = vpop.f32.mrf.mxu0
        %v946 = vadd.f32 0.0, %v945
        %947 = vdwg.mxu0
        %v948 = vmul.f32 %v946, 0.125
        %v949 = vsel %vm514, %v948, -inf
        %950 = vmax.xlane.f32.xlu0 %v949
        %v951 = vpop.xlane.xlu0 %950
        %v952 = vsub.f32 %v948, %v951
        %v953 = vmul.f32 %v952, 1.442695
        %v954 = vpow.pop %v953
        %v955 = vsel %vm514, %v954, 0.0
        %956 = vadd.xlane.f32.xlu0 %v955
        %v957 = vpop.xlane.xlu0 %956
        %v958 = vrcp.pop %v957
        %v959 = vmul.f32 %v957, %v958
        %v960 = vsub.f32 1.0, %v959
        %v961 = vmul.f32 %v958, %v960
        %v962 = vadd.f32 %v958, %v961
        %vm963 = vweird.f32 %v957
        %vm964 = vweird.f32 %v958
        %vm965 = vmor %vm963, %vm964
        %v966 = vsel %vm965, %v958, %v962
        %v967 = vand.u32 2147483647, %v957
        %vm968 = vcmp.eq.f32.partialorder %v967, 8.507059e+37
        %v969 = vand.u32 %v957, 2147483648
        %v970 = vor.u32 1.1754944e-38, %v969
        %v971 = vsel %vm968, %v970, %v966
        %v972 = vmul.f32 %v954, %v971
        %v974 = vsel %vm514, %v972, 0
        %976 = vmatpush.msra.mxu0 0.0
        %977 = vmatpush.msra.mxu0 0.0
        %978 = vmatpush.msra.mxu0 0.0
        %979 = vmatpush.msra.mxu0 0.0
        %980 = vmatpush.msra.mxu0 0.0
        %981 = vmatpush.msra.mxu0 0.0
        %982 = vmatpush.msra.mxu0 0.0
        %983 = vmatpush.msra.mxu0 0.0
        %984 = vmatpush.msra.mxu0 0.0
        %985 = vmatpush.msra.mxu0 0.0
        %986 = vmatpush.msra.mxu0 0.0
        %987 = vmatpush.msra.mxu0 0.0
        %988 = vmatpush.msra.mxu0 0.0
        %989 = vmatpush.msra.mxu0 0.0
        %990 = vmatpush.msra.mxu0 0.0
        %991 = vmatpush.msra.mxu0 %v464
        %992 = vmatmul.f32.gmra.mxu0 %v974
        %v993 = vpop.f32.mrf.mxu0
        %v994 = vadd.f32 0.0, %v993
        %995 = vdwg.mxu0
        %v996 = vld [vmem:[%s2 + $0x100] sm:$0xff]
        %v997 = vld [vmem:[%s2 + $0x108] sm:$0xff]
        %v998 = vld [vmem:[%s2 + $0x110] sm:$0xff]
        %v999 = vld [vmem:[%s2 + $0x118] sm:$0xff]
        %v1000 = vld [vmem:[%s2 + $0x120] sm:$0xff]
        %v1001 = vld [vmem:[%s2 + $0x128] sm:$0xff]
        %v1002 = vld [vmem:[%s2 + $0x130] sm:$0xff]
        %v1003 = vld [vmem:[%s2 + $0x138] sm:$0xff]
        %v1005 = vsel %vm486, %v994, 0
        %1007 = vmatpush.msra.mxu0 0.0
        %1008 = vmatpush.msra.mxu0 0.0
        %1009 = vmatpush.msra.mxu0 0.0
        %1010 = vmatpush.msra.mxu0 0.0
        %1011 = vmatpush.msra.mxu0 0.0
        %1012 = vmatpush.msra.mxu0 0.0
        %1013 = vmatpush.msra.mxu0 0.0
        %1014 = vmatpush.msra.mxu0 0.0
        %1015 = vmatpush.msra.mxu0 %v1003
        %1016 = vmatpush.msra.mxu0 %v1002
        %1017 = vmatpush.msra.mxu0 %v1001
        %1018 = vmatpush.msra.mxu0 %v1000
        %1019 = vmatpush.msra.mxu0 %v999
        %1020 = vmatpush.msra.mxu0 %v998
        %1021 = vmatpush.msra.mxu0 %v997
        %1022 = vmatpush.msra.mxu0 %v996
        %1023 = vmatmul.f32.gmra.mxu0 %v1005
        %v1024 = vpop.f32.mrf.mxu0
        %v1025 = vadd.f32 0.0, %v1024
        %1026 = vdwg.mxu0
        %v1027 = vadd.f32 %v921, %v1025
        %1028 = vrot.lane.b32.xlu0 %v304, 64
        %v1029 = vpop.permute.xlu0 %1028
        %1030 = vrot.lane.b32.xlu0 %v384, 64
        %v1031 = vpop.permute.xlu0 %1030
        %v1032 = vsel %vm486, %v1029, 0
        %v1034 = vsel %vm486, %v1031, 0
        %1036 = vmatpush.xpose.msra.mxu0 0.0
        %1037 = vmatpush.xpose.msra.mxu0 0.0
        %1038 = vmatpush.xpose.msra.mxu0 0.0
        %1039 = vmatpush.xpose.msra.mxu0 0.0
        %1040 = vmatpush.xpose.msra.mxu0 0.0
        %1041 = vmatpush.xpose.msra.mxu0 0.0
        %1042 = vmatpush.xpose.msra.mxu0 0.0
        %1043 = vmatpush.xpose.msra.mxu0 0.0
        %1044 = vmatpush.xpose.msra.mxu0 0.0
        %1045 = vmatpush.xpose.msra.mxu0 0.0
        %1046 = vmatpush.xpose.msra.mxu0 0.0
        %1047 = vmatpush.xpose.msra.mxu0 0.0
        %1048 = vmatpush.xpose.msra.mxu0 0.0
        %1049 = vmatpush.xpose.msra.mxu0 0.0
        %1050 = vmatpush.xpose.msra.mxu0 0.0
        %1051 = vmatpush.xpose.msra.mxu0 %v1034
        %1052 = vmatmul.f32.gmra.mxu0 %v1032
        %v1053 = vpop.f32.mrf.mxu0
        %v1054 = vadd.f32 0.0, %v1053
        %1055 = vdwg.mxu0
        %v1056 = vmul.f32 %v1054, 0.125
        %v1057 = vsel %vm514, %v1056, -inf
        %1058 = vmax.xlane.f32.xlu0 %v1057
        %v1059 = vpop.xlane.xlu0 %1058
        %v1060 = vsub.f32 %v1056, %v1059
        %v1061 = vmul.f32 %v1060, 1.442695
        %v1062 = vpow.pop %v1061
        %v1063 = vsel %vm514, %v1062, 0.0
        %1064 = vadd.xlane.f32.xlu0 %v1063
        %v1065 = vpop.xlane.xlu0 %1064
        %v1066 = vrcp.pop %v1065
        %v1067 = vmul.f32 %v1065, %v1066
        %v1068 = vsub.f32 1.0, %v1067
        %v1069 = vmul.f32 %v1066, %v1068
        %v1070 = vadd.f32 %v1066, %v1069
        %vm1071 = vweird.f32 %v1065
        %vm1072 = vweird.f32 %v1066
        %vm1073 = vmor %vm1071, %vm1072
        %v1074 = vsel %vm1073, %v1066, %v1070
        %v1075 = vand.u32 2147483647, %v1065
        %vm1076 = vcmp.eq.f32.partialorder %v1075, 8.507059e+37
        %v1077 = vand.u32 %v1065, 2147483648
        %v1078 = vor.u32 1.1754944e-38, %v1077
        %v1079 = vsel %vm1076, %v1078, %v1074
        %v1080 = vmul.f32 %v1062, %v1079
        %1082 = vrot.lane.b32.xlu0 %v464, 64
        %v1083 = vpop.permute.xlu0 %1082
        %v1086 = vsel %vm514, %v1080, 0
        %1088 = vmatpush.msra.mxu0 0.0
        %1089 = vmatpush.msra.mxu0 0.0
        %1090 = vmatpush.msra.mxu0 0.0
        %1091 = vmatpush.msra.mxu0 0.0
        %1092 = vmatpush.msra.mxu0 0.0
        %1093 = vmatpush.msra.mxu0 0.0
        %1094 = vmatpush.msra.mxu0 0.0
        %1095 = vmatpush.msra.mxu0 0.0
        %1096 = vmatpush.msra.mxu0 0.0
        %1097 = vmatpush.msra.mxu0 0.0
        %1098 = vmatpush.msra.mxu0 0.0
        %1099 = vmatpush.msra.mxu0 0.0
        %1100 = vmatpush.msra.mxu0 0.0
        %1101 = vmatpush.msra.mxu0 0.0
        %1102 = vmatpush.msra.mxu0 0.0
        %1103 = vmatpush.msra.mxu0 %v1083
        %1104 = vmatmul.f32.gmra.mxu0 %v1086
        %v1105 = vpop.f32.mrf.mxu0
        %v1106 = vadd.f32 0.0, %v1105
        %1107 = vdwg.mxu0
        %v1108 = vld [vmem:[%s2 + $0x140] sm:$0xff]
        %v1109 = vld [vmem:[%s2 + $0x148] sm:$0xff]
        %v1110 = vld [vmem:[%s2 + $0x150] sm:$0xff]
        %v1111 = vld [vmem:[%s2 + $0x158] sm:$0xff]
        %v1112 = vld [vmem:[%s2 + $0x160] sm:$0xff]
        %v1113 = vld [vmem:[%s2 + $0x168] sm:$0xff]
        %v1114 = vld [vmem:[%s2 + $0x170] sm:$0xff]
        %v1115 = vld [vmem:[%s2 + $0x178] sm:$0xff]
        %v1117 = vsel %vm486, %v1106, 0
        %1119 = vmatpush.msra.mxu0 0.0
        %1120 = vmatpush.msra.mxu0 0.0
        %1121 = vmatpush.msra.mxu0 0.0
        %1122 = vmatpush.msra.mxu0 0.0
        %1123 = vmatpush.msra.mxu0 0.0
        %1124 = vmatpush.msra.mxu0 0.0
        %1125 = vmatpush.msra.mxu0 0.0
        %1126 = vmatpush.msra.mxu0 0.0
        %1127 = vmatpush.msra.mxu0 %v1115
        %1128 = vmatpush.msra.mxu0 %v1114
        %1129 = vmatpush.msra.mxu0 %v1113
        %1130 = vmatpush.msra.mxu0 %v1112
        %1131 = vmatpush.msra.mxu0 %v1111
        %1132 = vmatpush.msra.mxu0 %v1110
        %1133 = vmatpush.msra.mxu0 %v1109
        %1134 = vmatpush.msra.mxu0 %v1108
        %1135 = vmatmul.f32.gmra.mxu0 %v1117
        %v1136 = vpop.f32.mrf.mxu0
        %v1137 = vadd.f32 0.0, %v1136
        %1138 = vdwg.mxu0
        %v1139 = vadd.f32 %v1027, %v1137
        %v1141 = vsel %vm486, %v324, 0
        %v1144 = vsel %vm486, %v404, 0
        %1146 = vmatpush.xpose.msra.mxu0 0.0
        %1147 = vmatpush.xpose.msra.mxu0 0.0
        %1148 = vmatpush.xpose.msra.mxu0 0.0
        %1149 = vmatpush.xpose.msra.mxu0 0.0
        %1150 = vmatpush.xpose.msra.mxu0 0.0
        %1151 = vmatpush.xpose.msra.mxu0 0.0
        %1152 = vmatpush.xpose.msra.mxu0 0.0
        %1153 = vmatpush.xpose.msra.mxu0 0.0
        %1154 = vmatpush.xpose.msra.mxu0 0.0
        %1155 = vmatpush.xpose.msra.mxu0 0.0
        %1156 = vmatpush.xpose.msra.mxu0 0.0
        %1157 = vmatpush.xpose.msra.mxu0 0.0
        %1158 = vmatpush.xpose.msra.mxu0 0.0
        %1159 = vmatpush.xpose.msra.mxu0 0.0
        %1160 = vmatpush.xpose.msra.mxu0 0.0
        %1161 = vmatpush.xpose.msra.mxu0 %v1144
        %1162 = vmatmul.f32.gmra.mxu0 %v1141
        %v1163 = vpop.f32.mrf.mxu0
        %v1164 = vadd.f32 0.0, %v1163
        %1165 = vdwg.mxu0
        %v1166 = vmul.f32 %v1164, 0.125
        %v1167 = vsel %vm514, %v1166, -inf
        %1168 = vmax.xlane.f32.xlu0 %v1167
        %v1169 = vpop.xlane.xlu0 %1168
        %v1170 = vsub.f32 %v1166, %v1169
        %v1171 = vmul.f32 %v1170, 1.442695
        %v1172 = vpow.pop %v1171
        %v1173 = vsel %vm514, %v1172, 0.0
        %1174 = vadd.xlane.f32.xlu0 %v1173
        %v1175 = vpop.xlane.xlu0 %1174
        %v1176 = vrcp.pop %v1175
        %v1177 = vmul.f32 %v1175, %v1176
        %v1178 = vsub.f32 1.0, %v1177
        %v1179 = vmul.f32 %v1176, %v1178
        %v1180 = vadd.f32 %v1176, %v1179
        %vm1181 = vweird.f32 %v1175
        %vm1182 = vweird.f32 %v1176
        %vm1183 = vmor %vm1181, %vm1182
        %v1184 = vsel %vm1183, %v1176, %v1180
        %v1185 = vand.u32 2147483647, %v1175
        %vm1186 = vcmp.eq.f32.partialorder %v1185, 8.507059e+37
        %v1187 = vand.u32 %v1175, 2147483648
        %v1188 = vor.u32 1.1754944e-38, %v1187
        %v1189 = vsel %vm1186, %v1188, %v1184
        %v1190 = vmul.f32 %v1172, %v1189
        %v1192 = vsel %vm514, %v1190, 0
        %1194 = vmatpush.msra.mxu0 0.0
        %1195 = vmatpush.msra.mxu0 0.0
        %1196 = vmatpush.msra.mxu0 0.0
        %1197 = vmatpush.msra.mxu0 0.0
        %1198 = vmatpush.msra.mxu0 0.0
        %1199 = vmatpush.msra.mxu0 0.0
        %1200 = vmatpush.msra.mxu0 0.0
        %1201 = vmatpush.msra.mxu0 0.0
        %1202 = vmatpush.msra.mxu0 0.0
        %1203 = vmatpush.msra.mxu0 0.0
        %1204 = vmatpush.msra.mxu0 0.0
        %1205 = vmatpush.msra.mxu0 0.0
        %1206 = vmatpush.msra.mxu0 0.0
        %1207 = vmatpush.msra.mxu0 0.0
        %1208 = vmatpush.msra.mxu0 0.0
        %1209 = vmatpush.msra.mxu0 %v484
        %1210 = vmatmul.f32.gmra.mxu0 %v1192
        %v1211 = vpop.f32.mrf.mxu0
        %v1212 = vadd.f32 0.0, %v1211
        %1213 = vdwg.mxu0
        %v1214 = vld [vmem:[%s2 + $0x180] sm:$0xff]
        %v1215 = vld [vmem:[%s2 + $0x188] sm:$0xff]
        %v1216 = vld [vmem:[%s2 + $0x190] sm:$0xff]
        %v1217 = vld [vmem:[%s2 + $0x198] sm:$0xff]
        %v1218 = vld [vmem:[%s2 + $0x1a0] sm:$0xff]
        %v1219 = vld [vmem:[%s2 + $0x1a8] sm:$0xff]
        %v1220 = vld [vmem:[%s2 + $0x1b0] sm:$0xff]
        %v1221 = vld [vmem:[%s2 + $0x1b8] sm:$0xff]
        %v1223 = vsel %vm486, %v1212, 0
        %1225 = vmatpush.msra.mxu0 0.0
        %1226 = vmatpush.msra.mxu0 0.0
        %1227 = vmatpush.msra.mxu0 0.0
        %1228 = vmatpush.msra.mxu0 0.0
        %1229 = vmatpush.msra.mxu0 0.0
        %1230 = vmatpush.msra.mxu0 0.0
        %1231 = vmatpush.msra.mxu0 0.0
        %1232 = vmatpush.msra.mxu0 0.0
        %1233 = vmatpush.msra.mxu0 %v1221
        %1234 = vmatpush.msra.mxu0 %v1220
        %1235 = vmatpush.msra.mxu0 %v1219
        %1236 = vmatpush.msra.mxu0 %v1218
        %1237 = vmatpush.msra.mxu0 %v1217
        %1238 = vmatpush.msra.mxu0 %v1216
        %1239 = vmatpush.msra.mxu0 %v1215
        %1240 = vmatpush.msra.mxu0 %v1214
        %1241 = vmatmul.f32.gmra.mxu0 %v1223
        %v1242 = vpop.f32.mrf.mxu0
        %v1243 = vadd.f32 0.0, %v1242
        %1244 = vdwg.mxu0
        %v1245 = vadd.f32 %v1139, %v1243
        %1246 = vrot.lane.b32.xlu0 %v324, 64
        %v1247 = vpop.permute.xlu0 %1246
        %1248 = vrot.lane.b32.xlu0 %v404, 64
        %v1249 = vpop.permute.xlu0 %1248
        %v1250 = vsel %vm486, %v1247, 0
        %v1252 = vsel %vm486, %v1249, 0
        %1254 = vmatpush.xpose.msra.mxu0 0.0
        %1255 = vmatpush.xpose.msra.mxu0 0.0
        %1256 = vmatpush.xpose.msra.mxu0 0.0
        %1257 = vmatpush.xpose.msra.mxu0 0.0
        %1258 = vmatpush.xpose.msra.mxu0 0.0
        %1259 = vmatpush.xpose.msra.mxu0 0.0
        %1260 = vmatpush.xpose.msra.mxu0 0.0
        %1261 = vmatpush.xpose.msra.mxu0 0.0
        %1262 = vmatpush.xpose.msra.mxu0 0.0
        %1263 = vmatpush.xpose.msra.mxu0 0.0
        %1264 = vmatpush.xpose.msra.mxu0 0.0
        %1265 = vmatpush.xpose.msra.mxu0 0.0
        %1266 = vmatpush.xpose.msra.mxu0 0.0
        %1267 = vmatpush.xpose.msra.mxu0 0.0
        %1268 = vmatpush.xpose.msra.mxu0 0.0
        %1269 = vmatpush.xpose.msra.mxu0 %v1252
        %1270 = vmatmul.f32.gmra.mxu0 %v1250
        %v1271 = vpop.f32.mrf.mxu0
        %v1272 = vadd.f32 0.0, %v1271
        %1273 = vdwg.mxu0
        %v1274 = vmul.f32 %v1272, 0.125
        %v1275 = vsel %vm514, %v1274, -inf
        %1276 = vmax.xlane.f32.xlu0 %v1275
        %v1277 = vpop.xlane.xlu0 %1276
        %v1278 = vsub.f32 %v1274, %v1277
        %v1279 = vmul.f32 %v1278, 1.442695
        %v1280 = vpow.pop %v1279
        %v1281 = vsel %vm514, %v1280, 0.0
        %1282 = vadd.xlane.f32.xlu0 %v1281
        %v1283 = vpop.xlane.xlu0 %1282
        %v1284 = vrcp.pop %v1283
        %v1285 = vmul.f32 %v1283, %v1284
        %v1286 = vsub.f32 1.0, %v1285
        %v1287 = vmul.f32 %v1284, %v1286
        %v1288 = vadd.f32 %v1284, %v1287
        %vm1289 = vweird.f32 %v1283
        %vm1290 = vweird.f32 %v1284
        %vm1291 = vmor %vm1289, %vm1290
        %v1292 = vsel %vm1291, %v1284, %v1288
        %v1293 = vand.u32 2147483647, %v1283
        %vm1294 = vcmp.eq.f32.partialorder %v1293, 8.507059e+37
        %v1295 = vand.u32 %v1283, 2147483648
        %v1296 = vor.u32 1.1754944e-38, %v1295
        %v1297 = vsel %vm1294, %v1296, %v1292
        %v1298 = vmul.f32 %v1280, %v1297
        %1300 = vrot.lane.b32.xlu0 %v484, 64
        %v1301 = vpop.permute.xlu0 %1300
        %v1304 = vsel %vm514, %v1298, 0
        %1306 = vmatpush.msra.mxu0 0.0
        %1307 = vmatpush.msra.mxu0 0.0
        %1308 = vmatpush.msra.mxu0 0.0
        %1309 = vmatpush.msra.mxu0 0.0
        %1310 = vmatpush.msra.mxu0 0.0
        %1311 = vmatpush.msra.mxu0 0.0
        %1312 = vmatpush.msra.mxu0 0.0
        %1313 = vmatpush.msra.mxu0 0.0
        %1314 = vmatpush.msra.mxu0 0.0
        %1315 = vmatpush.msra.mxu0 0.0
        %1316 = vmatpush.msra.mxu0 0.0
        %1317 = vmatpush.msra.mxu0 0.0
        %1318 = vmatpush.msra.mxu0 0.0
        %1319 = vmatpush.msra.mxu0 0.0
        %1320 = vmatpush.msra.mxu0 0.0
        %1321 = vmatpush.msra.mxu0 %v1301
        %1322 = vmatmul.f32.gmra.mxu0 %v1304
        %v1323 = vpop.f32.mrf.mxu0
        %v1324 = vadd.f32 0.0, %v1323
        %1325 = vdwg.mxu0
        %v1326 = vld [vmem:[%s2 + $0x1c0] sm:$0xff]
        %v1327 = vld [vmem:[%s2 + $0x1c8] sm:$0xff]
        %v1328 = vld [vmem:[%s2 + $0x1d0] sm:$0xff]
        %v1329 = vld [vmem:[%s2 + $0x1d8] sm:$0xff]
        %v1330 = vld [vmem:[%s2 + $0x1e0] sm:$0xff]
        %v1331 = vld [vmem:[%s2 + $0x1e8] sm:$0xff]
        %v1332 = vld [vmem:[%s2 + $0x1f0] sm:$0xff]
        %v1333 = vld [vmem:[%s2 + $0x1f8] sm:$0xff]
        %v1335 = vsel %vm486, %v1324, 0
        %1337 = vmatpush.msra.mxu0 0.0
        %1338 = vmatpush.msra.mxu0 0.0
        %1339 = vmatpush.msra.mxu0 0.0
        %1340 = vmatpush.msra.mxu0 0.0
        %1341 = vmatpush.msra.mxu0 0.0
        %1342 = vmatpush.msra.mxu0 0.0
        %1343 = vmatpush.msra.mxu0 0.0
        %1344 = vmatpush.msra.mxu0 0.0
        %1345 = vmatpush.msra.mxu0 %v1333
        %1346 = vmatpush.msra.mxu0 %v1332
        %1347 = vmatpush.msra.mxu0 %v1331
        %1348 = vmatpush.msra.mxu0 %v1330
        %1349 = vmatpush.msra.mxu0 %v1329
        %1350 = vmatpush.msra.mxu0 %v1328
        %1351 = vmatpush.msra.mxu0 %v1327
        %1352 = vmatpush.msra.mxu0 %v1326
        %1353 = vmatmul.f32.gmra.mxu0 %v1335
        %v1354 = vpop.f32.mrf.mxu0
        %v1355 = vadd.f32 0.0, %v1354
        %1356 = vdwg.mxu0
        %v1357 = vadd.f32 %v1245, %v1355
        %v1358 = vld [vmem:[%s3] sm:$0x1]
        %v1360 = vperm.slane %v1358, 0
        %v1362 = vadd.f32 %v1357, %v1360
        %1363 = vst.msk [vmem:[%s188] sm:$0xff] %vm242, %v1362
        %s1364 = sand.u32 %s115, 1
        %s1365 = scalar_lea.sflag [#allocation3], %s1364
        %s1366 = sand.u32 %s115, 1
        %s1367 = smul.addr %s1366, 8
        %s1368 = scalar_lea.vmem [#allocation2], %s1367
        // Predicated region
        $region37: #{attention_forward.1} parent=35 // pred_check
          %p1369 = pneg %p125
        $region38: #{attention_forward.1} parent=35 // pred_check_branch
          %1371 = sbr.rel (%p1369) target = $region40
        $region39: #{attention_forward.1} parent=35 // pred_region
          %1373 = vsyncadd %s1365, 0
          %s1374 = smul.addr %s18, 8
          %s1375 = scalar_lea.hbm %s4, %s1374
          %s1377 = sshll.u32 %s1368, 4
          %s1378 = int_to_ptr.vmem [resolvable:$true] %s1377
          %s1379 = sshll.u32 %s1375, 4
          %s1380 = int_to_ptr.hbm [resolvable:$true] %s1379
          %1382 = dma.vmem_to_hbm [thread:$0]  %s1378, 128, %s1380, %s1365
        $region40: #{attention_forward.1} parent=35 // pred_fallthru
          _
      $region36: #{attention_forward.1} parent=5 // pred_fallthru
        _
      %p1383 = scmp.le.s32.totalorder 2, %s13
      // Predicated region
      $region41: #{attention_forward.1} parent=5 // pred_check
        %p1384 = pneg %p1383
      $region42: #{attention_forward.1} parent=5 // pred_check_branch
        %1386 = sbr.rel (%p1384) target = $region44
      $region43: #{attention_forward.1} parent=5 // pred_region
        %s1387 = ssub.s32 %s13, 2
        // Predicated region
        $region45: #{attention_forward.1} parent=43 // pred_check
          %p1388 = pneg %p131
        $region46: #{attention_forward.1} parent=43 // pred_check_branch
          %1390 = sbr.rel (%p1388) target = $region48
        $region47: #{attention_forward.1} parent=43 // pred_region
          %s1391 = sand.u32 %s116, 1
          %s1392 = scalar_lea.sflag [#allocation3], %s1391
          %s1393 = sand.u32 %s116, 1
          %s1394 = smul.addr %s1393, 8
          %s1395 = scalar_lea.vmem [#allocation2], %s1394
          %1397 = dma.done %s1392, 128
        $region48: #{attention_forward.1} parent=43 // pred_fallthru
          _
      $region44: #{attention_forward.1} parent=5 // pred_fallthru
        _
    $region6: #{attention_forward.1} parent=1 // loop_footer
      %s17 = sadd.s32 1, %s13
    $region7: #{attention_forward.1} parent=1 // loop_footer_branch
      %12 = sbr.rel target = $region3
    $region8: #{attention_forward.1} parent=1 // loop_exit
      _
    %1398 = vsyncpa [#allocation3], 1
    %s1399 = scalar_lea.sflag [#allocation3], 1
    %1400 = vsyncpa %s1399, 1

</llo_original>
